<compile_context>
chip_gen: v6e
topology: v6e:2x2x1
jax: 0.10.0
libtpu: 0.0.40
codegen_flags: <defaults>
</compile_context>

<pallas_src>
import jax
import jax.numpy as jnp
import numpy as np
from jax import lax
from jax.experimental import pallas as pl
from jax.experimental.pallas import tpu as pltpu

LRELU_SLOPE = 0.1
KERNEL_SIZE = 3
DILATIONS = (1, 3, 5)
DMAX = max(DILATIONS)   # largest "same" padding = get_padding(3, 5) = 5
PAD = 128               # lane-aligned margin (>= DMAX): center store and the
                        # slab read at column PAD are unmasked / aligned


def _leaky_relu(v):
    return jnp.where(v > 0, v, LRELU_SLOPE * v)


def resblock1_kernel(x_ref, w1_ref, b1_ref, w2_ref, b2_ref, o_ref, scr):
    # x_ref : (1, C, L)        f32   one batch element per grid step
    # w*_ref: (3, C, 3C)       bf16  taps fused along the contraction axis
    # b*_ref: (3, C, 1)        f32
    # scr   : (3C, L + 2*PAD)  bf16  staging slab for the three shifted taps
    C = x_ref.shape[1]
    L = x_ref.shape[2]

    def dilated_conv(xt_f32, w_fused, b, d):
        # xt_f32: (C, L) f32; w_fused: (C, 3C) bf16; b: (C, 1) f32; dilation d.
        xt_b = xt_f32.astype(jnp.bfloat16)

        # Zero exactly the d-wide "same"-padding strips inside the read
        # window [PAD, PAD+L).  These columns are never touched by the
        # shifted stores below (for the current d), so order vs. the stores
        # is irrelevant; re-zeroing every conv removes any stale data left
        # by a previous stage that used a smaller dilation.
        zstrip = jnp.zeros((C, d), dtype=jnp.bfloat16)
        scr[0:C, PAD:PAD + d] = zstrip                       # left pad of x[t-d]
        scr[2 * C:3 * C, PAD + L - d:PAD + L] = zstrip       # right pad of x[t+d]

        # Three shifted stores: after these, scr[:, PAD:PAD+L] equals
        # [x[t-d]; x[t]; x[t+d]] stacked along the contraction axis.
        scr[0:C, PAD + d:PAD + d + L] = xt_b                 # tap k=0 -> x[t-d]
        scr[C:2 * C, PAD:PAD + L] = xt_b                     # tap k=1 -> x[t]
        scr[2 * C:3 * C, PAD - d:PAD - d + L] = xt_b         # tap k=2 -> x[t+d]

        rhs = scr[:, PAD:PAD + L]                            # (3C, L) bf16, aligned view
        out = jnp.dot(w_fused, rhs, preferred_element_type=jnp.float32)
        return out + b                                       # (C, L) f32

    x = x_ref[0]  # (C, L) f32

    for s, d in enumerate(DILATIONS):
        xt = _leaky_relu(x)
        xt = dilated_conv(xt, w1_ref[s], b1_ref[s], d)
        xt = _leaky_relu(xt)
        xt = dilated_conv(xt, w2_ref[s], b2_ref[s], 1)
        x = xt + x

    o_ref[0] = x.astype(o_ref.dtype)


def resblock1_pallas(x, w1, b1, w2, b2):
    """x: (N, C, L) f32.
    w1, w2: (3, C, C, K) f32 — PyTorch Conv1d layout (C_out, C_in, K) per stage
            (weight_norm already folded into the effective weight).
    b1, b2: (3, C) f32.
    """
    N, C, L = x.shape
    assert C % 16 == 0, "bf16 path needs C to be a multiple of 16"
    assert L % 128 == 0, "L must be a multiple of 128 lanes"

    def fuse(w):
        # (3, C_out, C_in, K) -> (3, C_out, K*C_in): tap-major contraction
        # blocks (k=0 | k=1 | k=2), matching the scratch row blocks. bf16.
        return (jnp.transpose(w, (0, 1, 3, 2))
                .reshape(3, C, KERNEL_SIZE * C)
                .astype(jnp.bfloat16))

    w1f, w2f = fuse(w1), fuse(w2)
    b1c = b1.reshape(3, C, 1).astype(jnp.float32)
    b2c = b2.reshape(3, C, 1).astype(jnp.float32)

    # TODO(synk): for production HiFi-GAN shapes (N=1, L>=8192) add an L-axis
    # grid dimension with a +-12 element halo (redundant compute) so megacore
    # can split the time axis; not needed for correctness here.
    return pl.pallas_call(
        resblock1_kernel,
        out_shape=jax.ShapeDtypeStruct((N, C, L), x.dtype),
        grid_spec=pltpu.PrefetchScalarGridSpec(
            num_scalar_prefetch=0,
            grid=(N,),
            in_specs=[
                pl.BlockSpec((1, C, L), lambda n: (n, 0, 0)),
                pl.BlockSpec((3, C, KERNEL_SIZE * C), lambda n: (0, 0, 0)),
                pl.BlockSpec((3, C, 1), lambda n: (0, 0, 0)),
                pl.BlockSpec((3, C, KERNEL_SIZE * C), lambda n: (0, 0, 0)),
                pl.BlockSpec((3, C, 1), lambda n: (0, 0, 0)),
            ],
            out_specs=pl.BlockSpec((1, C, L), lambda n: (n, 0, 0)),
            scratch_shapes=[pltpu.VMEM((3 * C, L + 2 * PAD), jnp.bfloat16)],
        ),
        compiler_params=pltpu.CompilerParams(
            dimension_semantics=("parallel",),
            vmem_limit_bytes=48 * 1024 * 1024,
        ),
    )(x, w1f, b1c, w2f, b2c)


# ----------------------- pure-JAX reference (for verification) ------------
def _conv1d_ref(x, w, b, dilation):
    # x: (N, C, L); w: (C_out, C_in, K); b: (C_out,)
    pad = (KERNEL_SIZE * dilation - dilation) // 2
    y = lax.conv_general_dilated(
        x, w, window_strides=(1,), padding=[(pad, pad)],
        rhs_dilation=(dilation,),
        dimension_numbers=("NCH", "OIH", "NCH"))
    return y + b[None, :, None]


def resblock1_ref(x, w1, b1, w2, b2):
    for s, d in enumerate(DILATIONS):
        xt = jnp.where(x > 0, x, LRELU_SLOPE * x)
        xt = _conv1d_ref(xt, w1[s], b1[s], d)
        xt = jnp.where(xt > 0, xt, LRELU_SLOPE * xt)
        xt = _conv1d_ref(xt, w2[s], b2[s], 1)
        x = xt + x
    return x


if __name__ == "__main__":
    # Small shapes consistent with Conv1d(channels, channels, 3).
    # C >= 16 (multiple of 16) so the bf16 MXU path is valid.
    N, C, L = 2, 32, 256
    key = jax.random.PRNGKey(0)
    kx, kw1, kb1, kw2, kb2 = jax.random.split(key, 5)

    x = jax.random.normal(kx, (N, C, L), dtype=jnp.float32)
    # init_weights: normal(mean=0, std=0.01); weight_norm at init reproduces
    # the underlying weight, so plain effective weights are the right
    # synthetic parameterization.
    w1 = 0.01 * jax.random.normal(kw1, (3, C, C, KERNEL_SIZE), dtype=jnp.float32)
    w2 = 0.01 * jax.random.normal(kw2, (3, C, C, KERNEL_SIZE), dtype=jnp.float32)
    b1 = 0.01 * jax.random.normal(kb1, (3, C), dtype=jnp.float32)
    b2 = 0.01 * jax.random.normal(kb2, (3, C), dtype=jnp.float32)

    out = jax.block_until_ready(resblock1_pallas(x, w1, b1, w2, b2))
    ref = jax.block_until_ready(resblock1_ref(x, w1, b1, w2, b2))

    # bf16 matmul path -> relaxed tolerance; observed error is ~1e-4 absolute
    # at these magnitudes.
    np.testing.assert_allclose(np.asarray(out), np.asarray(ref),
                               rtol=1e-2, atol=1e-2)
    print("KERNEL_OK")
</pallas_src>

<mosaic_0001>
module attributes {stable_mosaic.version = 11 : i64} {
  func.func @resblock1_kernel(%arg0: i32, %arg1: memref<1x32x256xf32, #tpu.memory_space<vmem>>, %arg2: memref<3x32x96xbf16, #tpu.memory_space<vmem>>, %arg3: memref<3x32x1xf32, #tpu.memory_space<vmem>>, %arg4: memref<3x32x96xbf16, #tpu.memory_space<vmem>>, %arg5: memref<3x32x1xf32, #tpu.memory_space<vmem>>, %arg6: memref<1x32x256xf32, #tpu.memory_space<vmem>>, %arg7: memref<96x512xbf16, #tpu.memory_space<vmem>>) attributes {dimension_semantics = [#tpu.dimension_semantics<parallel>], iteration_bounds = array<i64: 2>, scalar_prefetch = 0 : i64, scratch_operands = 1 : i64, tpu.core_type = #tpu.core_type<tc>, window_params = [{transform_indices = @transform_0, window_bounds = array<i64: 1, 32, 256>}, {pipeline_mode = #tpu.pipeline_mode<synchronous>, transform_indices = @transform_1, window_bounds = array<i64: 3, 32, 96>}, {pipeline_mode = #tpu.pipeline_mode<synchronous>, transform_indices = @transform_2, window_bounds = array<i64: 3, 32, 1>}, {pipeline_mode = #tpu.pipeline_mode<synchronous>, transform_indices = @transform_3, window_bounds = array<i64: 3, 32, 96>}, {pipeline_mode = #tpu.pipeline_mode<synchronous>, transform_indices = @transform_4, window_bounds = array<i64: 3, 32, 1>}, {transform_indices = @transform_5, window_bounds = array<i64: 1, 32, 256>}]} {
    %c0 = arith.constant 0 : index
    %c0_0 = arith.constant 0 : index
    %c0_1 = arith.constant 0 : index
    %0 = vector.load %arg1[%c0, %c0_0, %c0_1] : memref<1x32x256xf32, #tpu.memory_space<vmem>>, vector<1x32x256xf32>
    %1 = vector.shape_cast %0 : vector<1x32x256xf32> to vector<32x256xf32>
    %cst = arith.constant 0.000000e+00 : f32
    %2 = vector.broadcast %cst : f32 to vector<32x256xf32>
    %3 = arith.cmpf ogt, %1, %2 : vector<32x256xf32>
    %cst_2 = arith.constant 1.000000e-01 : f32
    %4 = vector.broadcast %cst_2 : f32 to vector<32x256xf32>
    %5 = arith.mulf %4, %1 : vector<32x256xf32>
    %6 = arith.select %3, %1, %5 : vector<32x256xi1>, vector<32x256xf32>
    %c0_3 = arith.constant 0 : index
    %c0_4 = arith.constant 0 : index
    %c0_5 = arith.constant 0 : index
    %7 = vector.load %arg2[%c0_3, %c0_4, %c0_5] : memref<3x32x96xbf16, #tpu.memory_space<vmem>>, vector<1x32x96xbf16>
    %8 = vector.shape_cast %7 : vector<1x32x96xbf16> to vector<32x96xbf16>
    %c0_6 = arith.constant 0 : index
    %c0_7 = arith.constant 0 : index
    %c0_8 = arith.constant 0 : index
    %9 = vector.load %arg3[%c0_6, %c0_7, %c0_8] : memref<3x32x1xf32, #tpu.memory_space<vmem>>, vector<1x32x1xf32>
    %10 = vector.shape_cast %9 : vector<1x32x1xf32> to vector<32x1xf32>
    %11 = arith.truncf %6 : vector<32x256xf32> to vector<32x256xbf16>
    %cst_9 = arith.constant 0.000000e+00 : bf16
    %12 = vector.broadcast %cst_9 : bf16 to vector<32x1xbf16>
    %c0_10 = arith.constant 0 : index
    %c128 = arith.constant 128 : index
    %13 = vector.load %arg7[%c0_10, %c128] : memref<96x512xbf16, #tpu.memory_space<vmem>>, vector<32x1xbf16>
    tpu.vector_store %arg7[%c0_10, %c128], %12 {strides = array<i32>} : memref<96x512xbf16, #tpu.memory_space<vmem>>, vector<32x1xbf16>,
    %c64 = arith.constant 64 : index
    %c383 = arith.constant 383 : index
    %14 = vector.load %arg7[%c64, %c383] : memref<96x512xbf16, #tpu.memory_space<vmem>>, vector<32x1xbf16>
    tpu.vector_store %arg7[%c64, %c383], %12 {strides = array<i32>} : memref<96x512xbf16, #tpu.memory_space<vmem>>, vector<32x1xbf16>,
    %c0_11 = arith.constant 0 : index
    %c129 = arith.constant 129 : index
    %15 = vector.load %arg7[%c0_11, %c129] : memref<96x512xbf16, #tpu.memory_space<vmem>>, vector<32x256xbf16>
    tpu.vector_store %arg7[%c0_11, %c129], %11 {strides = array<i32>} : memref<96x512xbf16, #tpu.memory_space<vmem>>, vector<32x256xbf16>,
    %c32 = arith.constant 32 : index
    %c128_12 = arith.constant 128 : index
    %16 = vector.load %arg7[%c32, %c128_12] : memref<96x512xbf16, #tpu.memory_space<vmem>>, vector<32x256xbf16>
    tpu.vector_store %arg7[%c32, %c128_12], %11 {strides = array<i32>} : memref<96x512xbf16, #tpu.memory_space<vmem>>, vector<32x256xbf16>,
    %c64_13 = arith.constant 64 : index
    %c127 = arith.constant 127 : index
    %17 = vector.load %arg7[%c64_13, %c127] : memref<96x512xbf16, #tpu.memory_space<vmem>>, vector<32x256xbf16>
    tpu.vector_store %arg7[%c64_13, %c127], %11 {strides = array<i32>} : memref<96x512xbf16, #tpu.memory_space<vmem>>, vector<32x256xbf16>,
    %c0_14 = arith.constant 0 : index
    %c128_15 = arith.constant 128 : index
    %18 = vector.load %arg7[%c0_14, %c128_15] : memref<96x512xbf16, #tpu.memory_space<vmem>>, vector<96x256xbf16>
    %cst_16 = arith.constant dense<0.000000e+00> : vector<32x256xf32>
    %19 = tpu.matmul %8, %18, %cst_16 {dimension_numbers = #tpu.dot_dimension_numbers<[1], [0], [0], [1], [0, 0, 1, 1], [], []>} : vector<32x96xbf16>, vector<96x256xbf16>, vector<32x256xf32> -> vector<32x256xf32>
    %20 = vector.broadcast %10 : vector<32x1xf32> to vector<32x256xf32>
    %21 = arith.addf %19, %20 : vector<32x256xf32>
    %cst_17 = arith.constant 0.000000e+00 : f32
    %22 = vector.broadcast %cst_17 : f32 to vector<32x256xf32>
    %23 = arith.cmpf ogt, %21, %22 : vector<32x256xf32>
    %cst_18 = arith.constant 1.000000e-01 : f32
    %24 = vector.broadcast %cst_18 : f32 to vector<32x256xf32>
    %25 = arith.mulf %24, %21 : vector<32x256xf32>
    %26 = arith.select %23, %21, %25 : vector<32x256xi1>, vector<32x256xf32>
    %c0_19 = arith.constant 0 : index
    %c0_20 = arith.constant 0 : index
    %c0_21 = arith.constant 0 : index
    %27 = vector.load %arg4[%c0_19, %c0_20, %c0_21] : memref<3x32x96xbf16, #tpu.memory_space<vmem>>, vector<1x32x96xbf16>
    %28 = vector.shape_cast %27 : vector<1x32x96xbf16> to vector<32x96xbf16>
    %c0_22 = arith.constant 0 : index
    %c0_23 = arith.constant 0 : index
    %c0_24 = arith.constant 0 : index
    %29 = vector.load %arg5[%c0_22, %c0_23, %c0_24] : memref<3x32x1xf32, #tpu.memory_space<vmem>>, vector<1x32x1xf32>
    %30 = vector.shape_cast %29 : vector<1x32x1xf32> to vector<32x1xf32>
    %31 = arith.truncf %26 : vector<32x256xf32> to vector<32x256xbf16>
    %cst_25 = arith.constant 0.000000e+00 : bf16
    %32 = vector.broadcast %cst_25 : bf16 to vector<32x1xbf16>
    %c0_26 = arith.constant 0 : index
    %c128_27 = arith.constant 128 : index
    %33 = vector.load %arg7[%c0_26, %c128_27] : memref<96x512xbf16, #tpu.memory_space<vmem>>, vector<32x1xbf16>
    tpu.vector_store %arg7[%c0_26, %c128_27], %32 {strides = array<i32>} : memref<96x512xbf16, #tpu.memory_space<vmem>>, vector<32x1xbf16>,
    %c64_28 = arith.constant 64 : index
    %c383_29 = arith.constant 383 : index
    %34 = vector.load %arg7[%c64_28, %c383_29] : memref<96x512xbf16, #tpu.memory_space<vmem>>, vector<32x1xbf16>
    tpu.vector_store %arg7[%c64_28, %c383_29], %32 {strides = array<i32>} : memref<96x512xbf16, #tpu.memory_space<vmem>>, vector<32x1xbf16>,
    %c0_30 = arith.constant 0 : index
    %c129_31 = arith.constant 129 : index
    %35 = vector.load %arg7[%c0_30, %c129_31] : memref<96x512xbf16, #tpu.memory_space<vmem>>, vector<32x256xbf16>
    tpu.vector_store %arg7[%c0_30, %c129_31], %31 {strides = array<i32>} : memref<96x512xbf16, #tpu.memory_space<vmem>>, vector<32x256xbf16>,
    %c32_32 = arith.constant 32 : index
    %c128_33 = arith.constant 128 : index
    %36 = vector.load %arg7[%c32_32, %c128_33] : memref<96x512xbf16, #tpu.memory_space<vmem>>, vector<32x256xbf16>
    tpu.vector_store %arg7[%c32_32, %c128_33], %31 {strides = array<i32>} : memref<96x512xbf16, #tpu.memory_space<vmem>>, vector<32x256xbf16>,
    %c64_34 = arith.constant 64 : index
    %c127_35 = arith.constant 127 : index
    %37 = vector.load %arg7[%c64_34, %c127_35] : memref<96x512xbf16, #tpu.memory_space<vmem>>, vector<32x256xbf16>
    tpu.vector_store %arg7[%c64_34, %c127_35], %31 {strides = array<i32>} : memref<96x512xbf16, #tpu.memory_space<vmem>>, vector<32x256xbf16>,
    %c0_36 = arith.constant 0 : index
    %c128_37 = arith.constant 128 : index
    %38 = vector.load %arg7[%c0_36, %c128_37] : memref<96x512xbf16, #tpu.memory_space<vmem>>, vector<96x256xbf16>
    %cst_38 = arith.constant dense<0.000000e+00> : vector<32x256xf32>
    %39 = tpu.matmul %28, %38, %cst_38 {dimension_numbers = #tpu.dot_dimension_numbers<[1], [0], [0], [1], [0, 0, 1, 1], [], []>} : vector<32x96xbf16>, vector<96x256xbf16>, vector<32x256xf32> -> vector<32x256xf32>
    %40 = vector.broadcast %30 : vector<32x1xf32> to vector<32x256xf32>
    %41 = arith.addf %39, %40 : vector<32x256xf32>
    %42 = arith.addf %41, %1 : vector<32x256xf32>
    %cst_39 = arith.constant 0.000000e+00 : f32
    %43 = vector.broadcast %cst_39 : f32 to vector<32x256xf32>
    %44 = arith.cmpf ogt, %42, %43 : vector<32x256xf32>
    %cst_40 = arith.constant 1.000000e-01 : f32
    %45 = vector.broadcast %cst_40 : f32 to vector<32x256xf32>
    %46 = arith.mulf %45, %42 : vector<32x256xf32>
    %47 = arith.select %44, %42, %46 : vector<32x256xi1>, vector<32x256xf32>
    %c1 = arith.constant 1 : index
    %c0_41 = arith.constant 0 : index
    %c0_42 = arith.constant 0 : index
    %48 = vector.load %arg2[%c1, %c0_41, %c0_42] : memref<3x32x96xbf16, #tpu.memory_space<vmem>>, vector<1x32x96xbf16>
    %49 = vector.shape_cast %48 : vector<1x32x96xbf16> to vector<32x96xbf16>
    %c1_43 = arith.constant 1 : index
    %c0_44 = arith.constant 0 : index
    %c0_45 = arith.constant 0 : index
    %50 = vector.load %arg3[%c1_43, %c0_44, %c0_45] : memref<3x32x1xf32, #tpu.memory_space<vmem>>, vector<1x32x1xf32>
    %51 = vector.shape_cast %50 : vector<1x32x1xf32> to vector<32x1xf32>
    %52 = arith.truncf %47 : vector<32x256xf32> to vector<32x256xbf16>
    %cst_46 = arith.constant 0.000000e+00 : bf16
    %53 = vector.broadcast %cst_46 : bf16 to vector<32x3xbf16>
    %c0_47 = arith.constant 0 : index
    %c128_48 = arith.constant 128 : index
    %54 = vector.load %arg7[%c0_47, %c128_48] : memref<96x512xbf16, #tpu.memory_space<vmem>>, vector<32x3xbf16>
    tpu.vector_store %arg7[%c0_47, %c128_48], %53 {strides = array<i32>} : memref<96x512xbf16, #tpu.memory_space<vmem>>, vector<32x3xbf16>,
    %c64_49 = arith.constant 64 : index
    %c381 = arith.constant 381 : index
    %55 = vector.load %arg7[%c64_49, %c381] : memref<96x512xbf16, #tpu.memory_space<vmem>>, vector<32x3xbf16>
    tpu.vector_store %arg7[%c64_49, %c381], %53 {strides = array<i32>} : memref<96x512xbf16, #tpu.memory_space<vmem>>, vector<32x3xbf16>,
    %c0_50 = arith.constant 0 : index
    %c131 = arith.constant 131 : index
    %56 = vector.load %arg7[%c0_50, %c131] : memref<96x512xbf16, #tpu.memory_space<vmem>>, vector<32x256xbf16>
    tpu.vector_store %arg7[%c0_50, %c131], %52 {strides = array<i32>} : memref<96x512xbf16, #tpu.memory_space<vmem>>, vector<32x256xbf16>,
    %c32_51 = arith.constant 32 : index
    %c128_52 = arith.constant 128 : index
    %57 = vector.load %arg7[%c32_51, %c128_52] : memref<96x512xbf16, #tpu.memory_space<vmem>>, vector<32x256xbf16>
    tpu.vector_store %arg7[%c32_51, %c128_52], %52 {strides = array<i32>} : memref<96x512xbf16, #tpu.memory_space<vmem>>, vector<32x256xbf16>,
    %c64_53 = arith.constant 64 : index
    %c125 = arith.constant 125 : index
    %58 = vector.load %arg7[%c64_53, %c125] : memref<96x512xbf16, #tpu.memory_space<vmem>>, vector<32x256xbf16>
    tpu.vector_store %arg7[%c64_53, %c125], %52 {strides = array<i32>} : memref<96x512xbf16, #tpu.memory_space<vmem>>, vector<32x256xbf16>,
    %c0_54 = arith.constant 0 : index
    %c128_55 = arith.constant 128 : index
    %59 = vector.load %arg7[%c0_54, %c128_55] : memref<96x512xbf16, #tpu.memory_space<vmem>>, vector<96x256xbf16>
    %cst_56 = arith.constant dense<0.000000e+00> : vector<32x256xf32>
    %60 = tpu.matmul %49, %59, %cst_56 {dimension_numbers = #tpu.dot_dimension_numbers<[1], [0], [0], [1], [0, 0, 1, 1], [], []>} : vector<32x96xbf16>, vector<96x256xbf16>, vector<32x256xf32> -> vector<32x256xf32>
    %61 = vector.broadcast %51 : vector<32x1xf32> to vector<32x256xf32>
    %62 = arith.addf %60, %61 : vector<32x256xf32>
    %cst_57 = arith.constant 0.000000e+00 : f32
    %63 = vector.broadcast %cst_57 : f32 to vector<32x256xf32>
    %64 = arith.cmpf ogt, %62, %63 : vector<32x256xf32>
    %cst_58 = arith.constant 1.000000e-01 : f32
    %65 = vector.broadcast %cst_58 : f32 to vector<32x256xf32>
    %66 = arith.mulf %65, %62 : vector<32x256xf32>
    %67 = arith.select %64, %62, %66 : vector<32x256xi1>, vector<32x256xf32>
    %c1_59 = arith.constant 1 : index
    %c0_60 = arith.constant 0 : index
    %c0_61 = arith.constant 0 : index
    %68 = vector.load %arg4[%c1_59, %c0_60, %c0_61] : memref<3x32x96xbf16, #tpu.memory_space<vmem>>, vector<1x32x96xbf16>
    %69 = vector.shape_cast %68 : vector<1x32x96xbf16> to vector<32x96xbf16>
    %c1_62 = arith.constant 1 : index
    %c0_63 = arith.constant 0 : index
    %c0_64 = arith.constant 0 : index
    %70 = vector.load %arg5[%c1_62, %c0_63, %c0_64] : memref<3x32x1xf32, #tpu.memory_space<vmem>>, vector<1x32x1xf32>
    %71 = vector.shape_cast %70 : vector<1x32x1xf32> to vector<32x1xf32>
    %72 = arith.truncf %67 : vector<32x256xf32> to vector<32x256xbf16>
    %cst_65 = arith.constant 0.000000e+00 : bf16
    %73 = vector.broadcast %cst_65 : bf16 to vector<32x1xbf16>
    %c0_66 = arith.constant 0 : index
    %c128_67 = arith.constant 128 : index
    %74 = vector.load %arg7[%c0_66, %c128_67] : memref<96x512xbf16, #tpu.memory_space<vmem>>, vector<32x1xbf16>
    tpu.vector_store %arg7[%c0_66, %c128_67], %73 {strides = array<i32>} : memref<96x512xbf16, #tpu.memory_space<vmem>>, vector<32x1xbf16>,
    %c64_68 = arith.constant 64 : index
    %c383_69 = arith.constant 383 : index
    %75 = vector.load %arg7[%c64_68, %c383_69] : memref<96x512xbf16, #tpu.memory_space<vmem>>, vector<32x1xbf16>
    tpu.vector_store %arg7[%c64_68, %c383_69], %73 {strides = array<i32>} : memref<96x512xbf16, #tpu.memory_space<vmem>>, vector<32x1xbf16>,
    %c0_70 = arith.constant 0 : index
    %c129_71 = arith.constant 129 : index
    %76 = vector.load %arg7[%c0_70, %c129_71] : memref<96x512xbf16, #tpu.memory_space<vmem>>, vector<32x256xbf16>
    tpu.vector_store %arg7[%c0_70, %c129_71], %72 {strides = array<i32>} : memref<96x512xbf16, #tpu.memory_space<vmem>>, vector<32x256xbf16>,
    %c32_72 = arith.constant 32 : index
    %c128_73 = arith.constant 128 : index
    %77 = vector.load %arg7[%c32_72, %c128_73] : memref<96x512xbf16, #tpu.memory_space<vmem>>, vector<32x256xbf16>
    tpu.vector_store %arg7[%c32_72, %c128_73], %72 {strides = array<i32>} : memref<96x512xbf16, #tpu.memory_space<vmem>>, vector<32x256xbf16>,
    %c64_74 = arith.constant 64 : index
    %c127_75 = arith.constant 127 : index
    %78 = vector.load %arg7[%c64_74, %c127_75] : memref<96x512xbf16, #tpu.memory_space<vmem>>, vector<32x256xbf16>
    tpu.vector_store %arg7[%c64_74, %c127_75], %72 {strides = array<i32>} : memref<96x512xbf16, #tpu.memory_space<vmem>>, vector<32x256xbf16>,
    %c0_76 = arith.constant 0 : index
    %c128_77 = arith.constant 128 : index
    %79 = vector.load %arg7[%c0_76, %c128_77] : memref<96x512xbf16, #tpu.memory_space<vmem>>, vector<96x256xbf16>
    %cst_78 = arith.constant dense<0.000000e+00> : vector<32x256xf32>
    %80 = tpu.matmul %69, %79, %cst_78 {dimension_numbers = #tpu.dot_dimension_numbers<[1], [0], [0], [1], [0, 0, 1, 1], [], []>} : vector<32x96xbf16>, vector<96x256xbf16>, vector<32x256xf32> -> vector<32x256xf32>
    %81 = vector.broadcast %71 : vector<32x1xf32> to vector<32x256xf32>
    %82 = arith.addf %80, %81 : vector<32x256xf32>
    %83 = arith.addf %82, %42 : vector<32x256xf32>
    %cst_79 = arith.constant 0.000000e+00 : f32
    %84 = vector.broadcast %cst_79 : f32 to vector<32x256xf32>
    %85 = arith.cmpf ogt, %83, %84 : vector<32x256xf32>
    %cst_80 = arith.constant 1.000000e-01 : f32
    %86 = vector.broadcast %cst_80 : f32 to vector<32x256xf32>
    %87 = arith.mulf %86, %83 : vector<32x256xf32>
    %88 = arith.select %85, %83, %87 : vector<32x256xi1>, vector<32x256xf32>
    %c2 = arith.constant 2 : index
    %c0_81 = arith.constant 0 : index
    %c0_82 = arith.constant 0 : index
    %89 = vector.load %arg2[%c2, %c0_81, %c0_82] : memref<3x32x96xbf16, #tpu.memory_space<vmem>>, vector<1x32x96xbf16>
    %90 = vector.shape_cast %89 : vector<1x32x96xbf16> to vector<32x96xbf16>
    %c2_83 = arith.constant 2 : index
    %c0_84 = arith.constant 0 : index
    %c0_85 = arith.constant 0 : index
    %91 = vector.load %arg3[%c2_83, %c0_84, %c0_85] : memref<3x32x1xf32, #tpu.memory_space<vmem>>, vector<1x32x1xf32>
    %92 = vector.shape_cast %91 : vector<1x32x1xf32> to vector<32x1xf32>
    %93 = arith.truncf %88 : vector<32x256xf32> to vector<32x256xbf16>
    %cst_86 = arith.constant 0.000000e+00 : bf16
    %94 = vector.broadcast %cst_86 : bf16 to vector<32x5xbf16>
    %c0_87 = arith.constant 0 : index
    %c128_88 = arith.constant 128 : index
    %95 = vector.load %arg7[%c0_87, %c128_88] : memref<96x512xbf16, #tpu.memory_space<vmem>>, vector<32x5xbf16>
    tpu.vector_store %arg7[%c0_87, %c128_88], %94 {strides = array<i32>} : memref<96x512xbf16, #tpu.memory_space<vmem>>, vector<32x5xbf16>,
    %c64_89 = arith.constant 64 : index
    %c379 = arith.constant 379 : index
    %96 = vector.load %arg7[%c64_89, %c379] : memref<96x512xbf16, #tpu.memory_space<vmem>>, vector<32x5xbf16>
    tpu.vector_store %arg7[%c64_89, %c379], %94 {strides = array<i32>} : memref<96x512xbf16, #tpu.memory_space<vmem>>, vector<32x5xbf16>,
    %c0_90 = arith.constant 0 : index
    %c133 = arith.constant 133 : index
    %97 = vector.load %arg7[%c0_90, %c133] : memref<96x512xbf16, #tpu.memory_space<vmem>>, vector<32x256xbf16>
    tpu.vector_store %arg7[%c0_90, %c133], %93 {strides = array<i32>} : memref<96x512xbf16, #tpu.memory_space<vmem>>, vector<32x256xbf16>,
    %c32_91 = arith.constant 32 : index
    %c128_92 = arith.constant 128 : index
    %98 = vector.load %arg7[%c32_91, %c128_92] : memref<96x512xbf16, #tpu.memory_space<vmem>>, vector<32x256xbf16>
    tpu.vector_store %arg7[%c32_91, %c128_92], %93 {strides = array<i32>} : memref<96x512xbf16, #tpu.memory_space<vmem>>, vector<32x256xbf16>,
    %c64_93 = arith.constant 64 : index
    %c123 = arith.constant 123 : index
    %99 = vector.load %arg7[%c64_93, %c123] : memref<96x512xbf16, #tpu.memory_space<vmem>>, vector<32x256xbf16>
    tpu.vector_store %arg7[%c64_93, %c123], %93 {strides = array<i32>} : memref<96x512xbf16, #tpu.memory_space<vmem>>, vector<32x256xbf16>,
    %c0_94 = arith.constant 0 : index
    %c128_95 = arith.constant 128 : index
    %100 = vector.load %arg7[%c0_94, %c128_95] : memref<96x512xbf16, #tpu.memory_space<vmem>>, vector<96x256xbf16>
    %cst_96 = arith.constant dense<0.000000e+00> : vector<32x256xf32>
    %101 = tpu.matmul %90, %100, %cst_96 {dimension_numbers = #tpu.dot_dimension_numbers<[1], [0], [0], [1], [0, 0, 1, 1], [], []>} : vector<32x96xbf16>, vector<96x256xbf16>, vector<32x256xf32> -> vector<32x256xf32>
    %102 = vector.broadcast %92 : vector<32x1xf32> to vector<32x256xf32>
    %103 = arith.addf %101, %102 : vector<32x256xf32>
    %cst_97 = arith.constant 0.000000e+00 : f32
    %104 = vector.broadcast %cst_97 : f32 to vector<32x256xf32>
    %105 = arith.cmpf ogt, %103, %104 : vector<32x256xf32>
    %cst_98 = arith.constant 1.000000e-01 : f32
    %106 = vector.broadcast %cst_98 : f32 to vector<32x256xf32>
    %107 = arith.mulf %106, %103 : vector<32x256xf32>
    %108 = arith.select %105, %103, %107 : vector<32x256xi1>, vector<32x256xf32>
    %c2_99 = arith.constant 2 : index
    %c0_100 = arith.constant 0 : index
    %c0_101 = arith.constant 0 : index
    %109 = vector.load %arg4[%c2_99, %c0_100, %c0_101] : memref<3x32x96xbf16, #tpu.memory_space<vmem>>, vector<1x32x96xbf16>
    %110 = vector.shape_cast %109 : vector<1x32x96xbf16> to vector<32x96xbf16>
    %c2_102 = arith.constant 2 : index
    %c0_103 = arith.constant 0 : index
    %c0_104 = arith.constant 0 : index
    %111 = vector.load %arg5[%c2_102, %c0_103, %c0_104] : memref<3x32x1xf32, #tpu.memory_space<vmem>>, vector<1x32x1xf32>
    %112 = vector.shape_cast %111 : vector<1x32x1xf32> to vector<32x1xf32>
    %113 = arith.truncf %108 : vector<32x256xf32> to vector<32x256xbf16>
    %cst_105 = arith.constant 0.000000e+00 : bf16
    %114 = vector.broadcast %cst_105 : bf16 to vector<32x1xbf16>
    %c0_106 = arith.constant 0 : index
    %c128_107 = arith.constant 128 : index
    %115 = vector.load %arg7[%c0_106, %c128_107] : memref<96x512xbf16, #tpu.memory_space<vmem>>, vector<32x1xbf16>
    tpu.vector_store %arg7[%c0_106, %c128_107], %114 {strides = array<i32>} : memref<96x512xbf16, #tpu.memory_space<vmem>>, vector<32x1xbf16>,
    %c64_108 = arith.constant 64 : index
    %c383_109 = arith.constant 383 : index
    %116 = vector.load %arg7[%c64_108, %c383_109] : memref<96x512xbf16, #tpu.memory_space<vmem>>, vector<32x1xbf16>
    tpu.vector_store %arg7[%c64_108, %c383_109], %114 {strides = array<i32>} : memref<96x512xbf16, #tpu.memory_space<vmem>>, vector<32x1xbf16>,
    %c0_110 = arith.constant 0 : index
    %c129_111 = arith.constant 129 : index
    %117 = vector.load %arg7[%c0_110, %c129_111] : memref<96x512xbf16, #tpu.memory_space<vmem>>, vector<32x256xbf16>
    tpu.vector_store %arg7[%c0_110, %c129_111], %113 {strides = array<i32>} : memref<96x512xbf16, #tpu.memory_space<vmem>>, vector<32x256xbf16>,
    %c32_112 = arith.constant 32 : index
    %c128_113 = arith.constant 128 : index
    %118 = vector.load %arg7[%c32_112, %c128_113] : memref<96x512xbf16, #tpu.memory_space<vmem>>, vector<32x256xbf16>
    tpu.vector_store %arg7[%c32_112, %c128_113], %113 {strides = array<i32>} : memref<96x512xbf16, #tpu.memory_space<vmem>>, vector<32x256xbf16>,
    %c64_114 = arith.constant 64 : index
    %c127_115 = arith.constant 127 : index
    %119 = vector.load %arg7[%c64_114, %c127_115] : memref<96x512xbf16, #tpu.memory_space<vmem>>, vector<32x256xbf16>
    tpu.vector_store %arg7[%c64_114, %c127_115], %113 {strides = array<i32>} : memref<96x512xbf16, #tpu.memory_space<vmem>>, vector<32x256xbf16>,
    %c0_116 = arith.constant 0 : index
    %c128_117 = arith.constant 128 : index
    %120 = vector.load %arg7[%c0_116, %c128_117] : memref<96x512xbf16, #tpu.memory_space<vmem>>, vector<96x256xbf16>
    %cst_118 = arith.constant dense<0.000000e+00> : vector<32x256xf32>
    %121 = tpu.matmul %110, %120, %cst_118 {dimension_numbers = #tpu.dot_dimension_numbers<[1], [0], [0], [1], [0, 0, 1, 1], [], []>} : vector<32x96xbf16>, vector<96x256xbf16>, vector<32x256xf32> -> vector<32x256xf32>
    %122 = vector.broadcast %112 : vector<32x1xf32> to vector<32x256xf32>
    %123 = arith.addf %121, %122 : vector<32x256xf32>
    %124 = arith.addf %123, %83 : vector<32x256xf32>
    %c0_119 = arith.constant 0 : index
    %c0_120 = arith.constant 0 : index
    %c0_121 = arith.constant 0 : index
    %125 = vector.load %arg6[%c0_119, %c0_120, %c0_121] : memref<1x32x256xf32, #tpu.memory_space<vmem>>, vector<1x32x256xf32>
    %126 = vector.shape_cast %125 : vector<1x32x256xf32> to vector<32x256xf32>
    %127 = vector.shape_cast %124 : vector<32x256xf32> to vector<1x32x256xf32>
    tpu.vector_store %arg6[%c0_119, %c0_120, %c0_121], %127 {strides = array<i32>} : memref<1x32x256xf32, #tpu.memory_space<vmem>>, vector<1x32x256xf32>,
    return
  }
  func.func @transform_0(%arg0: i32) -> (i32, i32, i32) {
    %c0_i32 = arith.constant 0 : i32
    %c0_i32_0 = arith.constant 0 : i32
    %c0_i32_1 = arith.constant 0 : i32
    return %arg0, %c0_i32, %c0_i32_0 : i32, i32, i32
  }
  func.func @transform_1(%arg0: i32) -> (i32, i32, i32) {
    %c0_i32 = arith.constant 0 : i32
    %c0_i32_0 = arith.constant 0 : i32
    %c0_i32_1 = arith.constant 0 : i32
    %c0_i32_2 = arith.constant 0 : i32
    return %c0_i32, %c0_i32_0, %c0_i32_1 : i32, i32, i32
  }
  func.func @transform_2(%arg0: i32) -> (i32, i32, i32) {
    %c0_i32 = arith.constant 0 : i32
    %c0_i32_0 = arith.constant 0 : i32
    %c0_i32_1 = arith.constant 0 : i32
    %c0_i32_2 = arith.constant 0 : i32
    return %c0_i32, %c0_i32_0, %c0_i32_1 : i32, i32, i32
  }
  func.func @transform_3(%arg0: i32) -> (i32, i32, i32) {
    %c0_i32 = arith.constant 0 : i32
    %c0_i32_0 = arith.constant 0 : i32
    %c0_i32_1 = arith.constant 0 : i32
    %c0_i32_2 = arith.constant 0 : i32
    return %c0_i32, %c0_i32_0, %c0_i32_1 : i32, i32, i32
  }
  func.func @transform_4(%arg0: i32) -> (i32, i32, i32) {
    %c0_i32 = arith.constant 0 : i32
    %c0_i32_0 = arith.constant 0 : i32
    %c0_i32_1 = arith.constant 0 : i32
    %c0_i32_2 = arith.constant 0 : i32
    return %c0_i32, %c0_i32_0, %c0_i32_1 : i32, i32, i32
  }
  func.func @transform_5(%arg0: i32) -> (i32, i32, i32) {
    %c0_i32 = arith.constant 0 : i32
    %c0_i32_0 = arith.constant 0 : i32
    %c0_i32_1 = arith.constant 0 : i32
    return %arg0, %c0_i32, %c0_i32_0 : i32, i32, i32
  }
}

</mosaic_0001>

<llo_original>
// kernel: tpu_custom_call.1
$region0: #{tpu_custom_call.1}
  #allocation0 [shape = 'u32[]', space=smem, size = 0x4, offset = 0x4, fixed_abs, tag = 'smem constant byte address 0x4 - core index']
  #allocation1 [shape = 'u32[144,128]{1,0:T(1,128)}', space=vmem, size = 0x12000, scoped, tag = 'internal scratch']
  #allocation2 [shape = 'bf16[96,512]{1,0:T(8,128)(2,1)}', space=vmem, size = 0x18000, scoped, tag = 'scratch operand']
  %s0 = inlined_call_operand.vmem [shape: f32[2,32,256], index: 0, kind: input, shape index: {}]
  %s1 = inlined_call_operand.vmem [shape: bf16[3,32,96], index: 1, kind: input, shape index: {}]
  %s2 = inlined_call_operand.vmem [shape: f32[3,32,1], index: 2, kind: input, shape index: {}]
  %s3 = inlined_call_operand.hbm [shape: bf16[3,32,96], index: 3, kind: input, shape index: {}]
  %s4 = inlined_call_operand.vmem [shape: f32[3,32,1], index: 4, kind: input, shape index: {}]
  %s5 = inlined_call_operand.hbm [shape: f32[2,32,256], index: 5, kind: output, shape index: {}]
  %s6 = sld [smem:[#allocation0]]
  $region57: #{tpu_custom_call.1} parent=0
    _
  %s8 = ssub.s32 1, %s6
  %s9 = scalar_select 0, %s8, %s6
  $region1: #{tpu_custom_call.1} parent=0
    #allocation3 [shape = 'u8[24576]{0}', space=vmem, size = 0x6000, scoped, tag = 'input window, operand 3, single buffered']
    #allocation4 [shape = 's32[2]{0}', space=sflag, size = 0x8, scoped, tag = 'scoped memory for tpu_custom_call.1']
    #allocation5 [shape = 's32[2]{0}', space=sflag, size = 0x8, scoped, tag = 'scoped memory for tpu_custom_call.1']
    #allocation6 [shape = 'u8[65536]{0}', space=vmem, size = 0x10000, scoped, tag = 'output window, operand 0']
    %10 = vsyncpa [#allocation4], 0
    %11 = vsyncpa [#allocation5], 0
    %s12 = scalar_lea.sflag [#allocation5], 1
    %13 = vsyncpa %s12, 0
    loop: start=0, step=1, limit=4
    $region2: #{tpu_custom_call.1} parent=1 // loop_pre_header
      _
    $region3: #{tpu_custom_call.1} parent=1 // loop_header
      %s15 = sphi 0, %s19
      %p16 = scmp.ge.s32.totalorder %s15, 4
      %s25 = sphi 0, %s27
      %s28 = sphi 0, %s25
      %s29 = sphi 0, %s28
      %s45 = sphi 0, %s29
      %s49 = sphi 0, %s49
      %s51 = sphi 0, %s49
      %s52 = sphi 0, %s51
      %s66 = sphi 0, %s52
      %s70 = sphi 0, %s70
      %s72 = sphi 0, %s70
      %s73 = sphi 0, %s72
      %s87 = sphi 0, %s73
      %s91 = sphi 0, %s91
      %s93 = sphi 0, %s91
      %s94 = sphi 0, %s93
      %s108 = sphi 0, %s94
      %s112 = sphi 0, %s112
      %s114 = sphi 0, %s112
      %s115 = sphi 0, %s114
      %s129 = sphi 0, %s115
      %s135 = sphi 0, %s137
      %s138 = sphi 0, %s135
      %s139 = sphi 0, %s138
      %s155 = sphi 0, %s139
    $region4: #{tpu_custom_call.1} parent=1 // loop_header_branch
      %18 = sbr.rel (%p16) target = $region8
    $region5: #{tpu_custom_call.1} parent=1 // loop_body
      %s20 = ssub.s32 %s15, 1
      %s21 = ssub.s32 %s15, 2
      %s22 = sadd.s32 %s15, 1
      %s23 = ssub.s32 %s15, %s22
      %p24 = scmp.eq.s32.totalorder %s23, 0
      %s26 = sadd.s32 %s25, 1
      %s27 = scalar_select %p24, %s25, %s26
      %p30 = pneg %p24
      %p31 = scmp.eq.s32.totalorder %s15, 1
      %p32 = por %p30, %p31
      %p33 = scmp.ne.s32.totalorder %s25, %s28
      %p34 = scmp.eq.s32.totalorder %s15, 0
      %p35 = por %p33, %p34
      %p36 = scmp.ne.s32.totalorder %s25, %s28
      %p37 = scmp.eq.s32.totalorder %s20, 1
      %p38 = por %p36, %p37
      %p39 = scmp.ne.s32.totalorder %s28, %s29
      %p40 = scmp.eq.s32.totalorder %s20, 0
      %p41 = por %p39, %p40
      %p42 = scmp.ne.s32.totalorder %s28, %s29
      %p43 = scmp.eq.s32.totalorder %s21, 1
      %p44 = por %p42, %p43
      %p46 = scmp.ne.s32.totalorder %s29, %s45
      %p47 = scmp.eq.s32.totalorder %s21, 0
      %p48 = por %p46, %p47
      %s50 = sadd.s32 %s49, 1
      %p53 = scmp.eq.s32.totalorder %s15, 1
      %p54 = scmp.ne.s32.totalorder %s49, %s51
      %p55 = scmp.eq.s32.totalorder %s15, 0
      %p56 = por %p54, %p55
      %p57 = scmp.ne.s32.totalorder %s49, %s51
      %p58 = scmp.eq.s32.totalorder %s20, 1
      %p59 = por %p57, %p58
      %p60 = scmp.ne.s32.totalorder %s51, %s52
      %p61 = scmp.eq.s32.totalorder %s20, 0
      %p62 = por %p60, %p61
      %p63 = scmp.ne.s32.totalorder %s51, %s52
      %p64 = scmp.eq.s32.totalorder %s21, 1
      %p65 = por %p63, %p64
      %p67 = scmp.ne.s32.totalorder %s52, %s66
      %p68 = scmp.eq.s32.totalorder %s21, 0
      %p69 = por %p67, %p68
      %s71 = sadd.s32 %s70, 1
      %p74 = scmp.eq.s32.totalorder %s15, 1
      %p75 = scmp.ne.s32.totalorder %s70, %s72
      %p76 = scmp.eq.s32.totalorder %s15, 0
      %p77 = por %p75, %p76
      %p78 = scmp.ne.s32.totalorder %s70, %s72
      %p79 = scmp.eq.s32.totalorder %s20, 1
      %p80 = por %p78, %p79
      %p81 = scmp.ne.s32.totalorder %s72, %s73
      %p82 = scmp.eq.s32.totalorder %s20, 0
      %p83 = por %p81, %p82
      %p84 = scmp.ne.s32.totalorder %s72, %s73
      %p85 = scmp.eq.s32.totalorder %s21, 1
      %p86 = por %p84, %p85
      %p88 = scmp.ne.s32.totalorder %s73, %s87
      %p89 = scmp.eq.s32.totalorder %s21, 0
      %p90 = por %p88, %p89
      %s92 = sadd.s32 %s91, 1
      %p95 = scmp.eq.s32.totalorder %s15, 1
      %p96 = scmp.ne.s32.totalorder %s91, %s93
      %p97 = scmp.eq.s32.totalorder %s15, 0
      %p98 = por %p96, %p97
      %p99 = scmp.ne.s32.totalorder %s91, %s93
      %p100 = scmp.eq.s32.totalorder %s20, 1
      %p101 = por %p99, %p100
      %p102 = scmp.ne.s32.totalorder %s93, %s94
      %p103 = scmp.eq.s32.totalorder %s20, 0
      %p104 = por %p102, %p103
      %p105 = scmp.ne.s32.totalorder %s93, %s94
      %p106 = scmp.eq.s32.totalorder %s21, 1
      %p107 = por %p105, %p106
      %p109 = scmp.ne.s32.totalorder %s94, %s108
      %p110 = scmp.eq.s32.totalorder %s21, 0
      %p111 = por %p109, %p110
      %s113 = sadd.s32 %s112, 1
      %p116 = scmp.eq.s32.totalorder %s15, 1
      %p117 = scmp.ne.s32.totalorder %s112, %s114
      %p118 = scmp.eq.s32.totalorder %s15, 0
      %p119 = por %p117, %p118
      %p120 = scmp.ne.s32.totalorder %s112, %s114
      %p121 = scmp.eq.s32.totalorder %s20, 1
      %p122 = por %p120, %p121
      %p123 = scmp.ne.s32.totalorder %s114, %s115
      %p124 = scmp.eq.s32.totalorder %s20, 0
      %p125 = por %p123, %p124
      %p126 = scmp.ne.s32.totalorder %s114, %s115
      %p127 = scmp.eq.s32.totalorder %s21, 1
      %p128 = por %p126, %p127
      %p130 = scmp.ne.s32.totalorder %s115, %s129
      %p131 = scmp.eq.s32.totalorder %s21, 0
      %p132 = por %p130, %p131
      %s133 = ssub.s32 %s15, %s22
      %p134 = scmp.eq.s32.totalorder %s133, 0
      %s136 = sadd.s32 %s135, 1
      %s137 = scalar_select %p134, %s135, %s136
      %p140 = pneg %p134
      %p141 = scmp.eq.s32.totalorder %s15, 1
      %p142 = por %p140, %p141
      %p143 = scmp.ne.s32.totalorder %s135, %s138
      %p144 = scmp.eq.s32.totalorder %s15, 0
      %p145 = por %p143, %p144
      %p146 = scmp.ne.s32.totalorder %s135, %s138
      %p147 = scmp.eq.s32.totalorder %s20, 1
      %p148 = por %p146, %p147
      %p149 = scmp.ne.s32.totalorder %s138, %s139
      %p150 = scmp.eq.s32.totalorder %s20, 0
      %p151 = por %p149, %p150
      %p152 = scmp.ne.s32.totalorder %s138, %s139
      %p153 = scmp.eq.s32.totalorder %s21, 1
      %p154 = por %p152, %p153
      %p156 = scmp.ne.s32.totalorder %s139, %s155
      %p157 = scmp.eq.s32.totalorder %s21, 0
      %p158 = por %p156, %p157
      %p159 = scmp.le.s32.totalorder 1, %s15
      %p160 = scmp.lt.s32.totalorder %s15, 3
      %p161 = pnand %p159, %p160
      %p162 = pneg %p161
      // Predicated region
      $region9: #{tpu_custom_call.1} parent=5 // pred_check
        _
      $region10: #{tpu_custom_call.1} parent=5 // pred_check_branch
        %164 = sbr.rel (%p161) target = $region12
      $region11: #{tpu_custom_call.1} parent=5 // pred_region
        %s165 = ssub.s32 %s15, 1
        // Predicated region
        $region13: #{tpu_custom_call.1} parent=11 // pred_check
          %p166 = pneg %p62
        $region14: #{tpu_custom_call.1} parent=11 // pred_check_branch
          %168 = sbr.rel (%p166) target = $region16
        $region15: #{tpu_custom_call.1} parent=11 // pred_region
          _
        $region16: #{tpu_custom_call.1} parent=11 // pred_fallthru
          _
        // Predicated region
        $region17: #{tpu_custom_call.1} parent=11 // pred_check
          %p169 = pneg %p83
        $region18: #{tpu_custom_call.1} parent=11 // pred_check_branch
          %171 = sbr.rel (%p169) target = $region20
        $region19: #{tpu_custom_call.1} parent=11 // pred_region
          _
        $region20: #{tpu_custom_call.1} parent=11 // pred_fallthru
          _
        // Predicated region
        $region21: #{tpu_custom_call.1} parent=11 // pred_check
          %p172 = pneg %p104
        $region22: #{tpu_custom_call.1} parent=11 // pred_check_branch
          %174 = sbr.rel (%p172) target = $region24
        $region23: #{tpu_custom_call.1} parent=11 // pred_region
          %s176 = ssub.s32 768, 768
          %177 = vsyncadd [#allocation4], %s176
          %s178 = sshll.u32 [#allocation3], 4
          %s179 = int_to_ptr.vmem [resolvable:$true] %s178
          %184 = dma.hbm_to_vmem [thread:$0]  %s3, 768, %s179, [#allocation4], 64, 64, 4
        $region24: #{tpu_custom_call.1} parent=11 // pred_fallthru
          _
        // Predicated region
        $region25: #{tpu_custom_call.1} parent=11 // pred_check
          %p185 = pneg %p125
        $region26: #{tpu_custom_call.1} parent=11 // pred_check_branch
          %187 = sbr.rel (%p185) target = $region28
        $region27: #{tpu_custom_call.1} parent=11 // pred_region
          _
        $region28: #{tpu_custom_call.1} parent=11 // pred_fallthru
          _
      $region12: #{tpu_custom_call.1} parent=5 // pred_fallthru
        _
      %p188 = scmp.lt.s32.totalorder %s15, 2
      // Predicated region
      $region29: #{tpu_custom_call.1} parent=5 // pred_check
        %p189 = pneg %p188
      $region30: #{tpu_custom_call.1} parent=5 // pred_check_branch
        %191 = sbr.rel (%p189) target = $region32
      $region31: #{tpu_custom_call.1} parent=5 // pred_region
        // Predicated region
        $region33: #{tpu_custom_call.1} parent=31 // pred_check
          %p192 = pneg %p35
        $region34: #{tpu_custom_call.1} parent=31 // pred_check_branch
          %194 = sbr.rel (%p192) target = $region36
        $region35: #{tpu_custom_call.1} parent=31 // pred_region
          %p195 = scmp.lt.s32.totalorder %s15, 1
          %s196 = scalar_select %p195, %s15, 1
          %s197 = smul.addr %s196, 8
          %s198 = smul.addr %s197, 8
          %s199 = scalar_lea.vmem %s0, %s198
        $region36: #{tpu_custom_call.1} parent=31 // pred_fallthru
          _
      $region32: #{tpu_custom_call.1} parent=5 // pred_fallthru
        _
      %p200 = scmp.le.s32.totalorder 1, %s15
      %p201 = scmp.lt.s32.totalorder %s15, 3
      %p202 = pnand %p200, %p201
      %p203 = pneg %p202
      // Predicated region
      $region37: #{tpu_custom_call.1} parent=5 // pred_check
        _
      $region38: #{tpu_custom_call.1} parent=5 // pred_check_branch
        %205 = sbr.rel (%p202) target = $region40
      $region39: #{tpu_custom_call.1} parent=5 // pred_region
        %s206 = ssub.s32 %s15, 1
        // Predicated region
        $region41: #{tpu_custom_call.1} parent=39 // pred_check
          %p207 = pneg %p104
        $region42: #{tpu_custom_call.1} parent=39 // pred_check_branch
          %209 = sbr.rel (%p207) target = $region44
        $region43: #{tpu_custom_call.1} parent=39 // pred_region
          %210 = dma.done [#allocation4], 768
        $region44: #{tpu_custom_call.1} parent=39 // pred_fallthru
          _
        %p211 = scmp.lt.s32.totalorder %s20, 1
        %s212 = scalar_select %p211, %s20, 1
        %s213 = smul.addr %s212, 8
        %s214 = smul.addr %s213, 8
        %s215 = scalar_lea.vmem %s0, %s214
        %p216 = pneg %p41
        %p217 = pneg %p38
        %p218 = pneg %p62
        %p219 = pneg %p59
        %p220 = pneg %p83
        %p221 = pneg %p80
        %p222 = pneg %p104
        %p223 = pneg %p101
        %p224 = pneg %p125
        %p225 = pneg %p122
        %p226 = pneg %p151
        %p227 = pneg %p148
        %s228 = sand.u32 %s138, 1
        %s229 = scalar_lea.sflag [#allocation5], %s228
        %s230 = sand.u32 %s138, 1
        %s231 = smul.addr %s230, 64
        %s232 = scalar_lea.vmem [#allocation6], %s231
        %p233 = scmp.lt.s32.totalorder %s20, 1
        %s234 = scalar_select %p233, %s20, 1
        %s235 = smul.addr %s234, 8
        %s236 = smul.addr %s235, 8
        %s237 = scalar_lea.vmem %s0, %s236
        %v239 = vld [vmem:[%s237] sm:$0xff]
        %v240 = vld [vmem:[%s237 + $0x8] sm:$0xff]
        %v241 = vld [vmem:[%s237 + $0x10] sm:$0xff]
        %v242 = vld [vmem:[%s237 + $0x18] sm:$0xff]
        %v243 = vld [vmem:[%s237 + $0x20] sm:$0xff]
        %v244 = vld [vmem:[%s237 + $0x28] sm:$0xff]
        %v245 = vld [vmem:[%s237 + $0x30] sm:$0xff]
        %v246 = vld [vmem:[%s237 + $0x38] sm:$0xff]
        %vm247 = vcmp.gt.f32.partialorder %v239, 0.0
        %vm248 = vcmp.gt.f32.partialorder %v240, 0.0
        %vm249 = vcmp.gt.f32.partialorder %v241, 0.0
        %vm250 = vcmp.gt.f32.partialorder %v242, 0.0
        %vm251 = vcmp.gt.f32.partialorder %v243, 0.0
        %vm252 = vcmp.gt.f32.partialorder %v244, 0.0
        %vm253 = vcmp.gt.f32.partialorder %v245, 0.0
        %vm254 = vcmp.gt.f32.partialorder %v246, 0.0
        %v255 = vmul.f32 %v239, 0.1
        %v256 = vmul.f32 %v240, 0.1
        %v257 = vmul.f32 %v241, 0.1
        %v258 = vmul.f32 %v242, 0.1
        %v259 = vmul.f32 %v243, 0.1
        %v260 = vmul.f32 %v244, 0.1
        %v261 = vmul.f32 %v245, 0.1
        %v262 = vmul.f32 %v246, 0.1
        %v263 = vsel %vm247, %v239, %v255
        %v264 = vsel %vm248, %v240, %v256
        %v265 = vsel %vm249, %v241, %v257
        %v266 = vsel %vm250, %v242, %v258
        %v267 = vsel %vm251, %v243, %v259
        %v268 = vsel %vm252, %v244, %v260
        %v269 = vsel %vm253, %v245, %v261
        %v270 = vsel %vm254, %v246, %v262
        %v271 = vld [vmem:[%s1] sm:$0xf]
        %v272 = vld [vmem:[%s1 + $0x4] sm:$0xf]
        %v273 = vld [vmem:[%s1 + $0x8] sm:$0xf]
        %v274 = vld [vmem:[%s1 + $0xc] sm:$0xf]
        %v275 = vld [vmem:[%s2] sm:$0xff]
        %v276 = vld [vmem:[%s2 + $0x8] sm:$0xff]
        %v277 = vld [vmem:[%s2 + $0x10] sm:$0xff]
        %v278 = vld [vmem:[%s2 + $0x18] sm:$0xff]
        %v279 = vpack.c.bf16 %v265, %v263
        %v280 = vpack.c.bf16 %v266, %v264
        %v281 = vpack.c.bf16 %v269, %v267
        %v282 = vpack.c.bf16 %v270, %v268
        %vm283 = vcmask 3072
        %284 = vst.msk [vmem:[#allocation2 + $0x4] sm:$0xf] %vm283, 0
        %285 = vst.msk [vmem:[#allocation2 + $0x14] sm:$0xf] %vm283, 0
        %286 = vst.msk [vmem:[#allocation2 + $0x24] sm:$0xf] %vm283, 0
        %287 = vst.msk [vmem:[#allocation2 + $0x34] sm:$0xf] %vm283, 0
        %vm288 = vcmask 1044472
        %289 = vst.msk [vmem:[#allocation2 + $0x88] sm:$0xf] %vm288, 0
        %290 = vst.msk [vmem:[#allocation2 + $0x98] sm:$0xf] %vm288, 0
        %291 = vst.msk [vmem:[#allocation2 + $0xa8] sm:$0xf] %vm288, 0
        %292 = vst.msk [vmem:[#allocation2 + $0xb8] sm:$0xf] %vm288, 0
        %v297 = vunpack.c.l.b16 %v279
        %v298 = vunpack.c.l.b16 %v280
        %v299 = vunpack.c.h.b16 %v279
        %v300 = vunpack.c.h.b16 %v280
        %v301 = vunpack.c.l.b16 %v281
        %v302 = vunpack.c.l.b16 %v282
        %v303 = vunpack.c.h.b16 %v281
        %v304 = vunpack.c.h.b16 %v282
        %v305 = vpack.c.b16 %v298, %v297
        %v306 = vpack.c.b16 %v300, %v299
        %v307 = vpack.c.b16 %v302, %v301
        %v308 = vpack.c.b16 %v304, %v303
        %309 = vrot.lane.b32.xlu0 %v305, 1
        %v310 = vpop.permute.xlu0 %309
        %311 = vrot.lane.b32.xlu0 %v306, 1
        %v312 = vpop.permute.xlu0 %311
        %313 = vrot.lane.b32.xlu0 %v307, 1
        %v314 = vpop.permute.xlu0 %313
        %315 = vrot.lane.b32.xlu0 %v308, 1
        %v316 = vpop.permute.xlu0 %315
        %v317 = vrot.slane %v310, 4
        %v318 = vrot.slane %v312, 4
        %v319 = vrot.slane %v314, 4
        %v320 = vrot.slane %v316, 4
        %vm321 = vcmask 7168
        %v322 = vsel %vm321, %v317, %v310
        %v323 = vsel %vm321, %v318, %v312
        %v324 = vsel %vm321, %v319, %v314
        %v325 = vsel %vm321, %v320, %v316
        %vm334 = vcmask 1043464
        %vm335 = vcmask 1047556
        %vm336 = vmor %vm335, %vm334
        %337 = vst.msk [vmem:[#allocation2 + $0x4] sm:$0xff] %vm336, %v322
        %338 = vst.msk [vmem:[#allocation2 + $0xc] sm:$0xf] %vm283, %v317
        %339 = vst.msk [vmem:[#allocation2 + $0x14] sm:$0xff] %vm336, %v323
        %340 = vst.msk [vmem:[#allocation2 + $0x1c] sm:$0xf] %vm283, %v318
        %341 = vst.msk [vmem:[#allocation2 + $0x24] sm:$0xff] %vm336, %v324
        %342 = vst.msk [vmem:[#allocation2 + $0x2c] sm:$0xf] %vm283, %v319
        %343 = vst.msk [vmem:[#allocation2 + $0x34] sm:$0xff] %vm336, %v325
        %344 = vst.msk [vmem:[#allocation2 + $0x3c] sm:$0xf] %vm283, %v320
        %349 = vst [vmem:[#allocation2 + $0x44] sm:$0xff] %v305
        %350 = vst [vmem:[#allocation2 + $0x54] sm:$0xff] %v306
        %351 = vst [vmem:[#allocation2 + $0x64] sm:$0xff] %v307
        %352 = vst [vmem:[#allocation2 + $0x74] sm:$0xff] %v308
        %353 = vrot.lane.b32.xlu0 %v305, 127
        %v354 = vpop.permute.xlu0 %353
        %355 = vrot.lane.b32.xlu0 %v306, 127
        %v356 = vpop.permute.xlu0 %355
        %357 = vrot.lane.b32.xlu0 %v307, 127
        %v358 = vpop.permute.xlu0 %357
        %359 = vrot.lane.b32.xlu0 %v308, 127
        %v360 = vpop.permute.xlu0 %359
        %v361 = vrot.slane %v354, 4
        %v362 = vrot.slane %v356, 4
        %v363 = vrot.slane %v358, 4
        %v364 = vrot.slane %v360, 4
        %vm365 = vcmask 1039360
        %v366 = vsel %vm365, %v361, %v354
        %v367 = vsel %vm365, %v362, %v356
        %v368 = vsel %vm365, %v363, %v358
        %v369 = vsel %vm365, %v364, %v360
        %vm378 = vmor %vm335, %vm288
        %379 = vst.msk [vmem:[#allocation2 + $0x80] sm:$0xff] %vm378, %v366
        %vm380 = vcmask 1035264
        %381 = vst.msk [vmem:[#allocation2 + $0x88] sm:$0xf] %vm380, %v361
        %382 = vst.msk [vmem:[#allocation2 + $0x90] sm:$0xff] %vm378, %v367
        %383 = vst.msk [vmem:[#allocation2 + $0x98] sm:$0xf] %vm380, %v362
        %384 = vst.msk [vmem:[#allocation2 + $0xa0] sm:$0xff] %vm378, %v368
        %385 = vst.msk [vmem:[#allocation2 + $0xa8] sm:$0xf] %vm380, %v363
        %386 = vst.msk [vmem:[#allocation2 + $0xb0] sm:$0xff] %vm378, %v369
        %387 = vst.msk [vmem:[#allocation2 + $0xb8] sm:$0xf] %vm380, %v364
        %v388 = vld [vmem:[#allocation2 + $0x4] sm:$0xff]
        %v389 = vld [vmem:[#allocation2 + $0x14] sm:$0xff]
        %v390 = vld [vmem:[#allocation2 + $0x24] sm:$0xff]
        %v391 = vld [vmem:[#allocation2 + $0x34] sm:$0xff]
        %v392 = vld [vmem:[#allocation2 + $0x44] sm:$0xff]
        %v393 = vld [vmem:[#allocation2 + $0x54] sm:$0xff]
        %v394 = vld [vmem:[#allocation2 + $0x64] sm:$0xff]
        %v395 = vld [vmem:[#allocation2 + $0x74] sm:$0xff]
        %v396 = vld [vmem:[#allocation2 + $0x84] sm:$0xff]
        %v397 = vld [vmem:[#allocation2 + $0x94] sm:$0xff]
        %v398 = vld [vmem:[#allocation2 + $0xa4] sm:$0xff]
        %v399 = vld [vmem:[#allocation2 + $0xb4] sm:$0xff]
        %401 = vset.pattern.permute.xlu0 0
        %402 = vperm.xlu0 %401, %v275
        %v403 = vpop.permute.xlu0 %402
        %406 = vset.pattern.permute.xlu0 0
        %407 = vperm.xlu0 %406, %v276
        %v408 = vpop.permute.xlu0 %407
        %411 = vset.pattern.permute.xlu0 0
        %412 = vperm.xlu0 %411, %v277
        %v413 = vpop.permute.xlu0 %412
        %416 = vset.pattern.permute.xlu0 0
        %417 = vperm.xlu0 %416, %v278
        %v418 = vpop.permute.xlu0 %417
        %v424 = vunpack.c.l.b16 %v271
        %v425 = vunpack.c.l.b16 %v272
        %v426 = vunpack.c.l.b16 %v273
        %v427 = vunpack.c.l.b16 %v274
        %v428 = vpack.c.b16 %v425, %v424
        %v429 = vpack.c.b16 %v427, %v426
        %v442 = vunpack.c.l.b16 %v388
        %v443 = vunpack.c.h.b16 %v388
        %v444 = vunpack.c.l.b16 %v389
        %v445 = vunpack.c.h.b16 %v389
        %v446 = vunpack.c.l.b16 %v390
        %v447 = vunpack.c.h.b16 %v390
        %v448 = vunpack.c.l.b16 %v391
        %v449 = vunpack.c.h.b16 %v391
        %v450 = vunpack.c.l.b16 %v392
        %v451 = vunpack.c.h.b16 %v392
        %v452 = vunpack.c.l.b16 %v393
        %v453 = vunpack.c.h.b16 %v393
        %v454 = vunpack.c.l.b16 %v394
        %v455 = vunpack.c.h.b16 %v394
        %v456 = vunpack.c.l.b16 %v395
        %v457 = vunpack.c.h.b16 %v395
        %v458 = vunpack.c.l.b16 %v396
        %v459 = vunpack.c.h.b16 %v396
        %v460 = vunpack.c.l.b16 %v397
        %v461 = vunpack.c.h.b16 %v397
        %v462 = vunpack.c.l.b16 %v398
        %v463 = vunpack.c.h.b16 %v398
        %v464 = vunpack.c.l.b16 %v399
        %v465 = vunpack.c.h.b16 %v399
        %v466 = vpack.c.b16 %v444, %v442
        %v467 = vpack.c.b16 %v445, %v443
        %v468 = vpack.c.b16 %v448, %v446
        %v469 = vpack.c.b16 %v449, %v447
        %v470 = vpack.c.b16 %v452, %v450
        %v471 = vpack.c.b16 %v453, %v451
        %v472 = vpack.c.b16 %v456, %v454
        %v473 = vpack.c.b16 %v457, %v455
        %v474 = vpack.c.b16 %v460, %v458
        %v475 = vpack.c.b16 %v461, %v459
        %v476 = vpack.c.b16 %v464, %v462
        %v477 = vpack.c.b16 %v465, %v463
        %vm490 = vcmask 785408
        %v492 = vsel %vm490, %v428, 0
        %v495 = vsel %vm490, %v429, 0
        %497 = vmatprep.subr.bf16.mxu0 0
        %498 = vmatpush1.bf16.msra.mxu0 0
        %499 = vmatprep.subr.bf16.mxu0 0
        %500 = vmatpush1.bf16.msra.mxu0 0
        %501 = vmatprep.subr.bf16.mxu0 %v477
        %502 = vmatpush1.bf16.msra.mxu0 %v476
        %503 = vmatprep.subr.bf16.mxu0 %v475
        %504 = vmatpush1.bf16.msra.mxu0 %v474
        %505 = vmatprep.subr.bf16.mxu0 %v473
        %506 = vmatpush1.bf16.msra.mxu0 %v472
        %507 = vmatprep.subr.bf16.mxu0 %v471
        %508 = vmatpush1.bf16.msra.mxu0 %v470
        %509 = vmatprep.subr.bf16.mxu0 %v469
        %510 = vmatpush1.bf16.msra.mxu0 %v468
        %511 = vmatprep.subr.bf16.mxu0 %v467
        %512 = vmatpush1.bf16.msra.mxu0 %v466
        %513 = vmatprep.subr.bf16.mxu0 0
        %514 = vmatpush2.bf16.msra.mxu0 0
        %515 = vmatprep.subr.bf16.mxu0 0
        %516 = vmatpush2.bf16.msra.mxu0 0
        %517 = vmatprep.subr.bf16.mxu0 0
        %518 = vmatpush2.bf16.msra.mxu0 0
        %519 = vmatprep.subr.bf16.mxu0 0
        %520 = vmatpush2.bf16.msra.mxu0 0
        %521 = vmatprep.subr.bf16.mxu0 0
        %522 = vmatpush2.bf16.msra.mxu0 0
        %523 = vmatprep.subr.bf16.mxu0 0
        %524 = vmatpush2.bf16.msra.mxu0 0
        %525 = vmatprep.subr.bf16.mxu0 0
        %526 = vmatpush2.bf16.msra.mxu0 0
        %527 = vmatprep.subr.bf16.mxu0 0
        %528 = vmatpush2.bf16.msra.mxu0 0
        %529 = vmatprep.mubr.bf16.mxu0 0
        %530 = vmatmul.mubr.bf16.gmra.mxu0 %v492
        %v531 = vpop.f32.mrf.mxu0
        %v532 = vadd.f32 %v403, %v531
        %v533 = vpop.f32.mrf.mxu0
        %v534 = vadd.f32 %v403, %v533
        %v535 = vpop.f32.mrf.mxu0
        %v536 = vadd.f32 %v408, %v535
        %v537 = vpop.f32.mrf.mxu0
        %v538 = vadd.f32 %v408, %v537
        %539 = vmatprep.mubr.bf16.mxu0 0
        %540 = vmatmul.mubr.bf16.gmra.mxu0 %v495
        %v541 = vpop.f32.mrf.mxu0
        %v542 = vadd.f32 %v413, %v541
        %v543 = vpop.f32.mrf.mxu0
        %v544 = vadd.f32 %v413, %v543
        %v545 = vpop.f32.mrf.mxu0
        %v546 = vadd.f32 %v418, %v545
        %v547 = vpop.f32.mrf.mxu0
        %v548 = vadd.f32 %v418, %v547
        %549 = vdwg.mxu0
        %vm550 = vcmp.gt.f32.partialorder %v532, 0.0
        %vm551 = vcmp.gt.f32.partialorder %v534, 0.0
        %vm552 = vcmp.gt.f32.partialorder %v536, 0.0
        %vm553 = vcmp.gt.f32.partialorder %v538, 0.0
        %vm554 = vcmp.gt.f32.partialorder %v542, 0.0
        %vm555 = vcmp.gt.f32.partialorder %v544, 0.0
        %vm556 = vcmp.gt.f32.partialorder %v546, 0.0
        %vm557 = vcmp.gt.f32.partialorder %v548, 0.0
        %v558 = vmul.f32 %v532, 0.1
        %v559 = vmul.f32 %v534, 0.1
        %v560 = vmul.f32 %v536, 0.1
        %v561 = vmul.f32 %v538, 0.1
        %v562 = vmul.f32 %v542, 0.1
        %v563 = vmul.f32 %v544, 0.1
        %v564 = vmul.f32 %v546, 0.1
        %v565 = vmul.f32 %v548, 0.1
        %v566 = vsel %vm550, %v532, %v558
        %v567 = vsel %vm551, %v534, %v559
        %v568 = vsel %vm552, %v536, %v560
        %v569 = vsel %vm553, %v538, %v561
        %v570 = vsel %vm554, %v542, %v562
        %v571 = vsel %vm555, %v544, %v563
        %v572 = vsel %vm556, %v546, %v564
        %v573 = vsel %vm557, %v548, %v565
        %v574 = vld [vmem:[#allocation3] sm:$0xf]
        %v575 = vld [vmem:[#allocation3 + $0x4] sm:$0xf]
        %v576 = vld [vmem:[#allocation3 + $0x8] sm:$0xf]
        %v577 = vld [vmem:[#allocation3 + $0xc] sm:$0xf]
        %v578 = vld [vmem:[%s4] sm:$0xff]
        %v579 = vld [vmem:[%s4 + $0x8] sm:$0xff]
        %v580 = vld [vmem:[%s4 + $0x10] sm:$0xff]
        %v581 = vld [vmem:[%s4 + $0x18] sm:$0xff]
        %v582 = vpack.c.bf16 %v568, %v566
        %v583 = vpack.c.bf16 %v569, %v567
        %v584 = vpack.c.bf16 %v572, %v570
        %v585 = vpack.c.bf16 %v573, %v571
        %586 = vst.msk [vmem:[#allocation2 + $0x4] sm:$0xf] %vm283, 0
        %587 = vst.msk [vmem:[#allocation2 + $0x14] sm:$0xf] %vm283, 0
        %588 = vst.msk [vmem:[#allocation2 + $0x24] sm:$0xf] %vm283, 0
        %589 = vst.msk [vmem:[#allocation2 + $0x34] sm:$0xf] %vm283, 0
        %590 = vst.msk [vmem:[#allocation2 + $0x88] sm:$0xf] %vm288, 0
        %591 = vst.msk [vmem:[#allocation2 + $0x98] sm:$0xf] %vm288, 0
        %592 = vst.msk [vmem:[#allocation2 + $0xa8] sm:$0xf] %vm288, 0
        %593 = vst.msk [vmem:[#allocation2 + $0xb8] sm:$0xf] %vm288, 0
        %v598 = vunpack.c.l.b16 %v582
        %v599 = vunpack.c.l.b16 %v583
        %v600 = vunpack.c.h.b16 %v582
        %v601 = vunpack.c.h.b16 %v583
        %v602 = vunpack.c.l.b16 %v584
        %v603 = vunpack.c.l.b16 %v585
        %v604 = vunpack.c.h.b16 %v584
        %v605 = vunpack.c.h.b16 %v585
        %v606 = vpack.c.b16 %v599, %v598
        %v607 = vpack.c.b16 %v601, %v600
        %v608 = vpack.c.b16 %v603, %v602
        %v609 = vpack.c.b16 %v605, %v604
        %610 = vrot.lane.b32.xlu0 %v606, 1
        %v611 = vpop.permute.xlu0 %610
        %612 = vrot.lane.b32.xlu0 %v607, 1
        %v613 = vpop.permute.xlu0 %612
        %614 = vrot.lane.b32.xlu0 %v608, 1
        %v615 = vpop.permute.xlu0 %614
        %616 = vrot.lane.b32.xlu0 %v609, 1
        %v617 = vpop.permute.xlu0 %616
        %v618 = vrot.slane %v611, 4
        %v619 = vrot.slane %v613, 4
        %v620 = vrot.slane %v615, 4
        %v621 = vrot.slane %v617, 4
        %v622 = vsel %vm321, %v618, %v611
        %v623 = vsel %vm321, %v619, %v613
        %v624 = vsel %vm321, %v620, %v615
        %v625 = vsel %vm321, %v621, %v617
        %634 = vst.msk [vmem:[#allocation2 + $0x4] sm:$0xff] %vm336, %v622
        %635 = vst.msk [vmem:[#allocation2 + $0xc] sm:$0xf] %vm283, %v618
        %636 = vst.msk [vmem:[#allocation2 + $0x14] sm:$0xff] %vm336, %v623
        %637 = vst.msk [vmem:[#allocation2 + $0x1c] sm:$0xf] %vm283, %v619
        %638 = vst.msk [vmem:[#allocation2 + $0x24] sm:$0xff] %vm336, %v624
        %639 = vst.msk [vmem:[#allocation2 + $0x2c] sm:$0xf] %vm283, %v620
        %640 = vst.msk [vmem:[#allocation2 + $0x34] sm:$0xff] %vm336, %v625
        %641 = vst.msk [vmem:[#allocation2 + $0x3c] sm:$0xf] %vm283, %v621
        %646 = vst [vmem:[#allocation2 + $0x44] sm:$0xff] %v606
        %647 = vst [vmem:[#allocation2 + $0x54] sm:$0xff] %v607
        %648 = vst [vmem:[#allocation2 + $0x64] sm:$0xff] %v608
        %649 = vst [vmem:[#allocation2 + $0x74] sm:$0xff] %v609
        %650 = vrot.lane.b32.xlu0 %v606, 127
        %v651 = vpop.permute.xlu0 %650
        %652 = vrot.lane.b32.xlu0 %v607, 127
        %v653 = vpop.permute.xlu0 %652
        %654 = vrot.lane.b32.xlu0 %v608, 127
        %v655 = vpop.permute.xlu0 %654
        %656 = vrot.lane.b32.xlu0 %v609, 127
        %v657 = vpop.permute.xlu0 %656
        %v658 = vrot.slane %v651, 4
        %v659 = vrot.slane %v653, 4
        %v660 = vrot.slane %v655, 4
        %v661 = vrot.slane %v657, 4
        %v662 = vsel %vm365, %v658, %v651
        %v663 = vsel %vm365, %v659, %v653
        %v664 = vsel %vm365, %v660, %v655
        %v665 = vsel %vm365, %v661, %v657
        %674 = vst.msk [vmem:[#allocation2 + $0x80] sm:$0xff] %vm378, %v662
        %675 = vst.msk [vmem:[#allocation2 + $0x88] sm:$0xf] %vm380, %v658
        %676 = vst.msk [vmem:[#allocation2 + $0x90] sm:$0xff] %vm378, %v663
        %677 = vst.msk [vmem:[#allocation2 + $0x98] sm:$0xf] %vm380, %v659
        %678 = vst.msk [vmem:[#allocation2 + $0xa0] sm:$0xff] %vm378, %v664
        %679 = vst.msk [vmem:[#allocation2 + $0xa8] sm:$0xf] %vm380, %v660
        %680 = vst.msk [vmem:[#allocation2 + $0xb0] sm:$0xff] %vm378, %v665
        %681 = vst.msk [vmem:[#allocation2 + $0xb8] sm:$0xf] %vm380, %v661
        %v682 = vld [vmem:[#allocation2 + $0x4] sm:$0xff]
        %v683 = vld [vmem:[#allocation2 + $0x14] sm:$0xff]
        %v684 = vld [vmem:[#allocation2 + $0x24] sm:$0xff]
        %v685 = vld [vmem:[#allocation2 + $0x34] sm:$0xff]
        %v686 = vld [vmem:[#allocation2 + $0x44] sm:$0xff]
        %v687 = vld [vmem:[#allocation2 + $0x54] sm:$0xff]
        %v688 = vld [vmem:[#allocation2 + $0x64] sm:$0xff]
        %v689 = vld [vmem:[#allocation2 + $0x74] sm:$0xff]
        %v690 = vld [vmem:[#allocation2 + $0x84] sm:$0xff]
        %v691 = vld [vmem:[#allocation2 + $0x94] sm:$0xff]
        %v692 = vld [vmem:[#allocation2 + $0xa4] sm:$0xff]
        %v693 = vld [vmem:[#allocation2 + $0xb4] sm:$0xff]
        %695 = vset.pattern.permute.xlu0 0
        %696 = vperm.xlu0 %695, %v578
        %v697 = vpop.permute.xlu0 %696
        %700 = vset.pattern.permute.xlu0 0
        %701 = vperm.xlu0 %700, %v579
        %v702 = vpop.permute.xlu0 %701
        %705 = vset.pattern.permute.xlu0 0
        %706 = vperm.xlu0 %705, %v580
        %v707 = vpop.permute.xlu0 %706
        %710 = vset.pattern.permute.xlu0 0
        %711 = vperm.xlu0 %710, %v581
        %v712 = vpop.permute.xlu0 %711
        %v718 = vunpack.c.l.b16 %v574
        %v719 = vunpack.c.l.b16 %v575
        %v720 = vunpack.c.l.b16 %v576
        %v721 = vunpack.c.l.b16 %v577
        %v722 = vpack.c.b16 %v719, %v718
        %v723 = vpack.c.b16 %v721, %v720
        %v736 = vunpack.c.l.b16 %v682
        %v737 = vunpack.c.h.b16 %v682
        %v738 = vunpack.c.l.b16 %v683
        %v739 = vunpack.c.h.b16 %v683
        %v740 = vunpack.c.l.b16 %v684
        %v741 = vunpack.c.h.b16 %v684
        %v742 = vunpack.c.l.b16 %v685
        %v743 = vunpack.c.h.b16 %v685
        %v744 = vunpack.c.l.b16 %v686
        %v745 = vunpack.c.h.b16 %v686
        %v746 = vunpack.c.l.b16 %v687
        %v747 = vunpack.c.h.b16 %v687
        %v748 = vunpack.c.l.b16 %v688
        %v749 = vunpack.c.h.b16 %v688
        %v750 = vunpack.c.l.b16 %v689
        %v751 = vunpack.c.h.b16 %v689
        %v752 = vunpack.c.l.b16 %v690
        %v753 = vunpack.c.h.b16 %v690
        %v754 = vunpack.c.l.b16 %v691
        %v755 = vunpack.c.h.b16 %v691
        %v756 = vunpack.c.l.b16 %v692
        %v757 = vunpack.c.h.b16 %v692
        %v758 = vunpack.c.l.b16 %v693
        %v759 = vunpack.c.h.b16 %v693
        %v760 = vpack.c.b16 %v738, %v736
        %v761 = vpack.c.b16 %v739, %v737
        %v762 = vpack.c.b16 %v742, %v740
        %v763 = vpack.c.b16 %v743, %v741
        %v764 = vpack.c.b16 %v746, %v744
        %v765 = vpack.c.b16 %v747, %v745
        %v766 = vpack.c.b16 %v750, %v748
        %v767 = vpack.c.b16 %v751, %v749
        %v768 = vpack.c.b16 %v754, %v752
        %v769 = vpack.c.b16 %v755, %v753
        %v770 = vpack.c.b16 %v758, %v756
        %v771 = vpack.c.b16 %v759, %v757
        %v785 = vsel %vm490, %v722, 0
        %v788 = vsel %vm490, %v723, 0
        %790 = vmatprep.subr.bf16.mxu0 0
        %791 = vmatpush1.bf16.msra.mxu0 0
        %792 = vmatprep.subr.bf16.mxu0 0
        %793 = vmatpush1.bf16.msra.mxu0 0
        %794 = vmatprep.subr.bf16.mxu0 %v771
        %795 = vmatpush1.bf16.msra.mxu0 %v770
        %796 = vmatprep.subr.bf16.mxu0 %v769
        %797 = vmatpush1.bf16.msra.mxu0 %v768
        %798 = vmatprep.subr.bf16.mxu0 %v767
        %799 = vmatpush1.bf16.msra.mxu0 %v766
        %800 = vmatprep.subr.bf16.mxu0 %v765
        %801 = vmatpush1.bf16.msra.mxu0 %v764
        %802 = vmatprep.subr.bf16.mxu0 %v763
        %803 = vmatpush1.bf16.msra.mxu0 %v762
        %804 = vmatprep.subr.bf16.mxu0 %v761
        %805 = vmatpush1.bf16.msra.mxu0 %v760
        %806 = vmatprep.subr.bf16.mxu0 0
        %807 = vmatpush2.bf16.msra.mxu0 0
        %808 = vmatprep.subr.bf16.mxu0 0
        %809 = vmatpush2.bf16.msra.mxu0 0
        %810 = vmatprep.subr.bf16.mxu0 0
        %811 = vmatpush2.bf16.msra.mxu0 0
        %812 = vmatprep.subr.bf16.mxu0 0
        %813 = vmatpush2.bf16.msra.mxu0 0
        %814 = vmatprep.subr.bf16.mxu0 0
        %815 = vmatpush2.bf16.msra.mxu0 0
        %816 = vmatprep.subr.bf16.mxu0 0
        %817 = vmatpush2.bf16.msra.mxu0 0
        %818 = vmatprep.subr.bf16.mxu0 0
        %819 = vmatpush2.bf16.msra.mxu0 0
        %820 = vmatprep.subr.bf16.mxu0 0
        %821 = vmatpush2.bf16.msra.mxu0 0
        %822 = vmatprep.mubr.bf16.mxu0 0
        %823 = vmatmul.mubr.bf16.gmra.mxu0 %v785
        %v824 = vpop.f32.mrf.mxu0
        %v825 = vadd.f32 %v697, %v824
        %v826 = vpop.f32.mrf.mxu0
        %v827 = vadd.f32 %v697, %v826
        %v828 = vpop.f32.mrf.mxu0
        %v829 = vadd.f32 %v702, %v828
        %v830 = vpop.f32.mrf.mxu0
        %v831 = vadd.f32 %v702, %v830
        %832 = vmatprep.mubr.bf16.mxu0 0
        %833 = vmatmul.mubr.bf16.gmra.mxu0 %v788
        %v834 = vpop.f32.mrf.mxu0
        %v835 = vadd.f32 %v707, %v834
        %v836 = vpop.f32.mrf.mxu0
        %v837 = vadd.f32 %v707, %v836
        %v838 = vpop.f32.mrf.mxu0
        %v839 = vadd.f32 %v712, %v838
        %v840 = vpop.f32.mrf.mxu0
        %v841 = vadd.f32 %v712, %v840
        %842 = vdwg.mxu0
        %v843 = vadd.f32 %v825, %v239
        %v844 = vadd.f32 %v827, %v240
        %v845 = vadd.f32 %v829, %v241
        %v846 = vadd.f32 %v831, %v242
        %v847 = vadd.f32 %v835, %v243
        %v848 = vadd.f32 %v837, %v244
        %v849 = vadd.f32 %v839, %v245
        %v850 = vadd.f32 %v841, %v246
        %vm851 = vcmp.gt.f32.partialorder %v843, 0.0
        %vm852 = vcmp.gt.f32.partialorder %v844, 0.0
        %vm853 = vcmp.gt.f32.partialorder %v845, 0.0
        %vm854 = vcmp.gt.f32.partialorder %v846, 0.0
        %vm855 = vcmp.gt.f32.partialorder %v847, 0.0
        %vm856 = vcmp.gt.f32.partialorder %v848, 0.0
        %vm857 = vcmp.gt.f32.partialorder %v849, 0.0
        %vm858 = vcmp.gt.f32.partialorder %v850, 0.0
        %v859 = vmul.f32 %v843, 0.1
        %v860 = vmul.f32 %v844, 0.1
        %v861 = vmul.f32 %v845, 0.1
        %v862 = vmul.f32 %v846, 0.1
        %v863 = vmul.f32 %v847, 0.1
        %v864 = vmul.f32 %v848, 0.1
        %v865 = vmul.f32 %v849, 0.1
        %v866 = vmul.f32 %v850, 0.1
        %v867 = vsel %vm851, %v843, %v859
        %v868 = vsel %vm852, %v844, %v860
        %v869 = vsel %vm853, %v845, %v861
        %v870 = vsel %vm854, %v846, %v862
        %v871 = vsel %vm855, %v847, %v863
        %v872 = vsel %vm856, %v848, %v864
        %v873 = vsel %vm857, %v849, %v865
        %v874 = vsel %vm858, %v850, %v866
        %s875 = scalar_lea.vmem %s1, 16
        %v876 = vld [vmem:[%s875] sm:$0xf]
        %v877 = vld [vmem:[%s875 + $0x4] sm:$0xf]
        %v878 = vld [vmem:[%s875 + $0x8] sm:$0xf]
        %v879 = vld [vmem:[%s875 + $0xc] sm:$0xf]
        %s880 = scalar_lea.vmem %s2, 32
        %v881 = vld [vmem:[%s880] sm:$0xff]
        %v882 = vld [vmem:[%s880 + $0x8] sm:$0xff]
        %v883 = vld [vmem:[%s880 + $0x10] sm:$0xff]
        %v884 = vld [vmem:[%s880 + $0x18] sm:$0xff]
        %v885 = vpack.c.bf16 %v869, %v867
        %v886 = vpack.c.bf16 %v870, %v868
        %v887 = vpack.c.bf16 %v873, %v871
        %v888 = vpack.c.bf16 %v874, %v872
        %vm889 = vcmask 19456
        %890 = vst.msk [vmem:[#allocation2 + $0x4] sm:$0xf] %vm889, 0
        %891 = vst.msk [vmem:[#allocation2 + $0x14] sm:$0xf] %vm889, 0
        %892 = vst.msk [vmem:[#allocation2 + $0x24] sm:$0xf] %vm889, 0
        %893 = vst.msk [vmem:[#allocation2 + $0x34] sm:$0xf] %vm889, 0
        %vm894 = vcmask 1044456
        %895 = vst.msk [vmem:[#allocation2 + $0x88] sm:$0xf] %vm894, 0
        %896 = vst.msk [vmem:[#allocation2 + $0x98] sm:$0xf] %vm894, 0
        %897 = vst.msk [vmem:[#allocation2 + $0xa8] sm:$0xf] %vm894, 0
        %898 = vst.msk [vmem:[#allocation2 + $0xb8] sm:$0xf] %vm894, 0
        %v903 = vunpack.c.l.b16 %v885
        %v904 = vunpack.c.l.b16 %v886
        %v905 = vunpack.c.h.b16 %v885
        %v906 = vunpack.c.h.b16 %v886
        %v907 = vunpack.c.l.b16 %v887
        %v908 = vunpack.c.l.b16 %v888
        %v909 = vunpack.c.h.b16 %v887
        %v910 = vunpack.c.h.b16 %v888
        %v911 = vpack.c.b16 %v904, %v903
        %v912 = vpack.c.b16 %v906, %v905
        %v913 = vpack.c.b16 %v908, %v907
        %v914 = vpack.c.b16 %v910, %v909
        %915 = vrot.lane.b32.xlu0 %v911, 3
        %v916 = vpop.permute.xlu0 %915
        %917 = vrot.lane.b32.xlu0 %v912, 3
        %v918 = vpop.permute.xlu0 %917
        %919 = vrot.lane.b32.xlu0 %v913, 3
        %v920 = vpop.permute.xlu0 %919
        %921 = vrot.lane.b32.xlu0 %v914, 3
        %v922 = vpop.permute.xlu0 %921
        %v923 = vrot.slane %v916, 4
        %v924 = vrot.slane %v918, 4
        %v925 = vrot.slane %v920, 4
        %v926 = vrot.slane %v922, 4
        %vm927 = vcmask 23552
        %v928 = vsel %vm927, %v923, %v916
        %v929 = vsel %vm927, %v924, %v918
        %v930 = vsel %vm927, %v925, %v920
        %v931 = vsel %vm927, %v926, %v922
        %vm940 = vcmask 1043480
        %vm941 = vmor %vm335, %vm940
        %942 = vst.msk [vmem:[#allocation2 + $0x4] sm:$0xff] %vm941, %v928
        %943 = vst.msk [vmem:[#allocation2 + $0xc] sm:$0xf] %vm889, %v923
        %944 = vst.msk [vmem:[#allocation2 + $0x14] sm:$0xff] %vm941, %v929
        %945 = vst.msk [vmem:[#allocation2 + $0x1c] sm:$0xf] %vm889, %v924
        %946 = vst.msk [vmem:[#allocation2 + $0x24] sm:$0xff] %vm941, %v930
        %947 = vst.msk [vmem:[#allocation2 + $0x2c] sm:$0xf] %vm889, %v925
        %948 = vst.msk [vmem:[#allocation2 + $0x34] sm:$0xff] %vm941, %v931
        %949 = vst.msk [vmem:[#allocation2 + $0x3c] sm:$0xf] %vm889, %v926
        %954 = vst [vmem:[#allocation2 + $0x44] sm:$0xff] %v911
        %955 = vst [vmem:[#allocation2 + $0x54] sm:$0xff] %v912
        %956 = vst [vmem:[#allocation2 + $0x64] sm:$0xff] %v913
        %957 = vst [vmem:[#allocation2 + $0x74] sm:$0xff] %v914
        %958 = vrot.lane.b32.xlu0 %v911, 125
        %v959 = vpop.permute.xlu0 %958
        %960 = vrot.lane.b32.xlu0 %v912, 125
        %v961 = vpop.permute.xlu0 %960
        %962 = vrot.lane.b32.xlu0 %v913, 125
        %v963 = vpop.permute.xlu0 %962
        %964 = vrot.lane.b32.xlu0 %v914, 125
        %v965 = vpop.permute.xlu0 %964
        %v966 = vrot.slane %v959, 4
        %v967 = vrot.slane %v961, 4
        %v968 = vrot.slane %v963, 4
        %v969 = vrot.slane %v965, 4
        %vm970 = vcmask 1022976
        %v971 = vsel %vm970, %v966, %v959
        %v972 = vsel %vm970, %v967, %v961
        %v973 = vsel %vm970, %v968, %v963
        %v974 = vsel %vm970, %v969, %v965
        %vm983 = vmor %vm335, %vm894
        %984 = vst.msk [vmem:[#allocation2 + $0x80] sm:$0xff] %vm983, %v971
        %vm985 = vcmask 1018880
        %986 = vst.msk [vmem:[#allocation2 + $0x88] sm:$0xf] %vm985, %v966
        %987 = vst.msk [vmem:[#allocation2 + $0x90] sm:$0xff] %vm983, %v972
        %988 = vst.msk [vmem:[#allocation2 + $0x98] sm:$0xf] %vm985, %v967
        %989 = vst.msk [vmem:[#allocation2 + $0xa0] sm:$0xff] %vm983, %v973
        %990 = vst.msk [vmem:[#allocation2 + $0xa8] sm:$0xf] %vm985, %v968
        %991 = vst.msk [vmem:[#allocation2 + $0xb0] sm:$0xff] %vm983, %v974
        %992 = vst.msk [vmem:[#allocation2 + $0xb8] sm:$0xf] %vm985, %v969
        %v993 = vld [vmem:[#allocation2 + $0x4] sm:$0xff]
        %v994 = vld [vmem:[#allocation2 + $0x14] sm:$0xff]
        %v995 = vld [vmem:[#allocation2 + $0x24] sm:$0xff]
        %v996 = vld [vmem:[#allocation2 + $0x34] sm:$0xff]
        %v997 = vld [vmem:[#allocation2 + $0x44] sm:$0xff]
        %v998 = vld [vmem:[#allocation2 + $0x54] sm:$0xff]
        %v999 = vld [vmem:[#allocation2 + $0x64] sm:$0xff]
        %v1000 = vld [vmem:[#allocation2 + $0x74] sm:$0xff]
        %v1001 = vld [vmem:[#allocation2 + $0x84] sm:$0xff]
        %v1002 = vld [vmem:[#allocation2 + $0x94] sm:$0xff]
        %v1003 = vld [vmem:[#allocation2 + $0xa4] sm:$0xff]
        %v1004 = vld [vmem:[#allocation2 + $0xb4] sm:$0xff]
        %1006 = vset.pattern.permute.xlu0 0
        %1007 = vperm.xlu0 %1006, %v881
        %v1008 = vpop.permute.xlu0 %1007
        %1011 = vset.pattern.permute.xlu0 0
        %1012 = vperm.xlu0 %1011, %v882
        %v1013 = vpop.permute.xlu0 %1012
        %1016 = vset.pattern.permute.xlu0 0
        %1017 = vperm.xlu0 %1016, %v883
        %v1018 = vpop.permute.xlu0 %1017
        %1021 = vset.pattern.permute.xlu0 0
        %1022 = vperm.xlu0 %1021, %v884
        %v1023 = vpop.permute.xlu0 %1022
        %v1029 = vunpack.c.l.b16 %v876
        %v1030 = vunpack.c.l.b16 %v877
        %v1031 = vunpack.c.l.b16 %v878
        %v1032 = vunpack.c.l.b16 %v879
        %v1033 = vpack.c.b16 %v1030, %v1029
        %v1034 = vpack.c.b16 %v1032, %v1031
        %v1047 = vunpack.c.l.b16 %v993
        %v1048 = vunpack.c.h.b16 %v993
        %v1049 = vunpack.c.l.b16 %v994
        %v1050 = vunpack.c.h.b16 %v994
        %v1051 = vunpack.c.l.b16 %v995
        %v1052 = vunpack.c.h.b16 %v995
        %v1053 = vunpack.c.l.b16 %v996
        %v1054 = vunpack.c.h.b16 %v996
        %v1055 = vunpack.c.l.b16 %v997
        %v1056 = vunpack.c.h.b16 %v997
        %v1057 = vunpack.c.l.b16 %v998
        %v1058 = vunpack.c.h.b16 %v998
        %v1059 = vunpack.c.l.b16 %v999
        %v1060 = vunpack.c.h.b16 %v999
        %v1061 = vunpack.c.l.b16 %v1000
        %v1062 = vunpack.c.h.b16 %v1000
        %v1063 = vunpack.c.l.b16 %v1001
        %v1064 = vunpack.c.h.b16 %v1001
        %v1065 = vunpack.c.l.b16 %v1002
        %v1066 = vunpack.c.h.b16 %v1002
        %v1067 = vunpack.c.l.b16 %v1003
        %v1068 = vunpack.c.h.b16 %v1003
        %v1069 = vunpack.c.l.b16 %v1004
        %v1070 = vunpack.c.h.b16 %v1004
        %v1071 = vpack.c.b16 %v1049, %v1047
        %v1072 = vpack.c.b16 %v1050, %v1048
        %v1073 = vpack.c.b16 %v1053, %v1051
        %v1074 = vpack.c.b16 %v1054, %v1052
        %v1075 = vpack.c.b16 %v1057, %v1055
        %v1076 = vpack.c.b16 %v1058, %v1056
        %v1077 = vpack.c.b16 %v1061, %v1059
        %v1078 = vpack.c.b16 %v1062, %v1060
        %v1079 = vpack.c.b16 %v1065, %v1063
        %v1080 = vpack.c.b16 %v1066, %v1064
        %v1081 = vpack.c.b16 %v1069, %v1067
        %v1082 = vpack.c.b16 %v1070, %v1068
        %v1096 = vsel %vm490, %v1033, 0
        %v1099 = vsel %vm490, %v1034, 0
        %1101 = vmatprep.subr.bf16.mxu0 0
        %1102 = vmatpush1.bf16.msra.mxu0 0
        %1103 = vmatprep.subr.bf16.mxu0 0
        %1104 = vmatpush1.bf16.msra.mxu0 0
        %1105 = vmatprep.subr.bf16.mxu0 %v1082
        %1106 = vmatpush1.bf16.msra.mxu0 %v1081
        %1107 = vmatprep.subr.bf16.mxu0 %v1080
        %1108 = vmatpush1.bf16.msra.mxu0 %v1079
        %1109 = vmatprep.subr.bf16.mxu0 %v1078
        %1110 = vmatpush1.bf16.msra.mxu0 %v1077
        %1111 = vmatprep.subr.bf16.mxu0 %v1076
        %1112 = vmatpush1.bf16.msra.mxu0 %v1075
        %1113 = vmatprep.subr.bf16.mxu0 %v1074
        %1114 = vmatpush1.bf16.msra.mxu0 %v1073
        %1115 = vmatprep.subr.bf16.mxu0 %v1072
        %1116 = vmatpush1.bf16.msra.mxu0 %v1071
        %1117 = vmatprep.subr.bf16.mxu0 0
        %1118 = vmatpush2.bf16.msra.mxu0 0
        %1119 = vmatprep.subr.bf16.mxu0 0
        %1120 = vmatpush2.bf16.msra.mxu0 0
        %1121 = vmatprep.subr.bf16.mxu0 0
        %1122 = vmatpush2.bf16.msra.mxu0 0
        %1123 = vmatprep.subr.bf16.mxu0 0
        %1124 = vmatpush2.bf16.msra.mxu0 0
        %1125 = vmatprep.subr.bf16.mxu0 0
        %1126 = vmatpush2.bf16.msra.mxu0 0
        %1127 = vmatprep.subr.bf16.mxu0 0
        %1128 = vmatpush2.bf16.msra.mxu0 0
        %1129 = vmatprep.subr.bf16.mxu0 0
        %1130 = vmatpush2.bf16.msra.mxu0 0
        %1131 = vmatprep.subr.bf16.mxu0 0
        %1132 = vmatpush2.bf16.msra.mxu0 0
        %1133 = vmatprep.mubr.bf16.mxu0 0
        %1134 = vmatmul.mubr.bf16.gmra.mxu0 %v1096
        %v1135 = vpop.f32.mrf.mxu0
        %v1136 = vadd.f32 %v1008, %v1135
        %v1137 = vpop.f32.mrf.mxu0
        %v1138 = vadd.f32 %v1008, %v1137
        %v1139 = vpop.f32.mrf.mxu0
        %v1140 = vadd.f32 %v1013, %v1139
        %v1141 = vpop.f32.mrf.mxu0
        %v1142 = vadd.f32 %v1013, %v1141
        %1143 = vmatprep.mubr.bf16.mxu0 0
        %1144 = vmatmul.mubr.bf16.gmra.mxu0 %v1099
        %v1145 = vpop.f32.mrf.mxu0
        %v1146 = vadd.f32 %v1018, %v1145
        %v1147 = vpop.f32.mrf.mxu0
        %v1148 = vadd.f32 %v1018, %v1147
        %v1149 = vpop.f32.mrf.mxu0
        %v1150 = vadd.f32 %v1023, %v1149
        %v1151 = vpop.f32.mrf.mxu0
        %v1152 = vadd.f32 %v1023, %v1151
        %1153 = vdwg.mxu0
        %vm1154 = vcmp.gt.f32.partialorder %v1136, 0.0
        %vm1155 = vcmp.gt.f32.partialorder %v1138, 0.0
        %vm1156 = vcmp.gt.f32.partialorder %v1140, 0.0
        %vm1157 = vcmp.gt.f32.partialorder %v1142, 0.0
        %vm1158 = vcmp.gt.f32.partialorder %v1146, 0.0
        %vm1159 = vcmp.gt.f32.partialorder %v1148, 0.0
        %vm1160 = vcmp.gt.f32.partialorder %v1150, 0.0
        %vm1161 = vcmp.gt.f32.partialorder %v1152, 0.0
        %v1162 = vmul.f32 %v1136, 0.1
        %v1163 = vmul.f32 %v1138, 0.1
        %v1164 = vmul.f32 %v1140, 0.1
        %v1165 = vmul.f32 %v1142, 0.1
        %v1166 = vmul.f32 %v1146, 0.1
        %v1167 = vmul.f32 %v1148, 0.1
        %v1168 = vmul.f32 %v1150, 0.1
        %v1169 = vmul.f32 %v1152, 0.1
        %v1170 = vsel %vm1154, %v1136, %v1162
        %v1171 = vsel %vm1155, %v1138, %v1163
        %v1172 = vsel %vm1156, %v1140, %v1164
        %v1173 = vsel %vm1157, %v1142, %v1165
        %v1174 = vsel %vm1158, %v1146, %v1166
        %v1175 = vsel %vm1159, %v1148, %v1167
        %v1176 = vsel %vm1160, %v1150, %v1168
        %v1177 = vsel %vm1161, %v1152, %v1169
        %s1178 = scalar_lea.vmem [#allocation3], 16
        %v1179 = vld [vmem:[%s1178] sm:$0xf]
        %v1180 = vld [vmem:[%s1178 + $0x4] sm:$0xf]
        %v1181 = vld [vmem:[%s1178 + $0x8] sm:$0xf]
        %v1182 = vld [vmem:[%s1178 + $0xc] sm:$0xf]
        %s1183 = scalar_lea.vmem %s4, 32
        %v1184 = vld [vmem:[%s1183] sm:$0xff]
        %v1185 = vld [vmem:[%s1183 + $0x8] sm:$0xff]
        %v1186 = vld [vmem:[%s1183 + $0x10] sm:$0xff]
        %v1187 = vld [vmem:[%s1183 + $0x18] sm:$0xff]
        %v1188 = vpack.c.bf16 %v1172, %v1170
        %v1189 = vpack.c.bf16 %v1173, %v1171
        %v1190 = vpack.c.bf16 %v1176, %v1174
        %v1191 = vpack.c.bf16 %v1177, %v1175
        %1192 = vst.msk [vmem:[#allocation2 + $0x4] sm:$0xf] %vm283, 0
        %1193 = vst.msk [vmem:[#allocation2 + $0x14] sm:$0xf] %vm283, 0
        %1194 = vst.msk [vmem:[#allocation2 + $0x24] sm:$0xf] %vm283, 0
        %1195 = vst.msk [vmem:[#allocation2 + $0x34] sm:$0xf] %vm283, 0
        %1196 = vst.msk [vmem:[#allocation2 + $0x88] sm:$0xf] %vm288, 0
        %1197 = vst.msk [vmem:[#allocation2 + $0x98] sm:$0xf] %vm288, 0
        %1198 = vst.msk [vmem:[#allocation2 + $0xa8] sm:$0xf] %vm288, 0
        %1199 = vst.msk [vmem:[#allocation2 + $0xb8] sm:$0xf] %vm288, 0
        %v1204 = vunpack.c.l.b16 %v1188
        %v1205 = vunpack.c.l.b16 %v1189
        %v1206 = vunpack.c.h.b16 %v1188
        %v1207 = vunpack.c.h.b16 %v1189
        %v1208 = vunpack.c.l.b16 %v1190
        %v1209 = vunpack.c.l.b16 %v1191
        %v1210 = vunpack.c.h.b16 %v1190
        %v1211 = vunpack.c.h.b16 %v1191
        %v1212 = vpack.c.b16 %v1205, %v1204
        %v1213 = vpack.c.b16 %v1207, %v1206
        %v1214 = vpack.c.b16 %v1209, %v1208
        %v1215 = vpack.c.b16 %v1211, %v1210
        %1216 = vrot.lane.b32.xlu0 %v1212, 1
        %v1217 = vpop.permute.xlu0 %1216
        %1218 = vrot.lane.b32.xlu0 %v1213, 1
        %v1219 = vpop.permute.xlu0 %1218
        %1220 = vrot.lane.b32.xlu0 %v1214, 1
        %v1221 = vpop.permute.xlu0 %1220
        %1222 = vrot.lane.b32.xlu0 %v1215, 1
        %v1223 = vpop.permute.xlu0 %1222
        %v1224 = vrot.slane %v1217, 4
        %v1225 = vrot.slane %v1219, 4
        %v1226 = vrot.slane %v1221, 4
        %v1227 = vrot.slane %v1223, 4
        %v1228 = vsel %vm321, %v1224, %v1217
        %v1229 = vsel %vm321, %v1225, %v1219
        %v1230 = vsel %vm321, %v1226, %v1221
        %v1231 = vsel %vm321, %v1227, %v1223
        %1240 = vst.msk [vmem:[#allocation2 + $0x4] sm:$0xff] %vm336, %v1228
        %1241 = vst.msk [vmem:[#allocation2 + $0xc] sm:$0xf] %vm283, %v1224
        %1242 = vst.msk [vmem:[#allocation2 + $0x14] sm:$0xff] %vm336, %v1229
        %1243 = vst.msk [vmem:[#allocation2 + $0x1c] sm:$0xf] %vm283, %v1225
        %1244 = vst.msk [vmem:[#allocation2 + $0x24] sm:$0xff] %vm336, %v1230
        %1245 = vst.msk [vmem:[#allocation2 + $0x2c] sm:$0xf] %vm283, %v1226
        %1246 = vst.msk [vmem:[#allocation2 + $0x34] sm:$0xff] %vm336, %v1231
        %1247 = vst.msk [vmem:[#allocation2 + $0x3c] sm:$0xf] %vm283, %v1227
        %1252 = vst [vmem:[#allocation2 + $0x44] sm:$0xff] %v1212
        %1253 = vst [vmem:[#allocation2 + $0x54] sm:$0xff] %v1213
        %1254 = vst [vmem:[#allocation2 + $0x64] sm:$0xff] %v1214
        %1255 = vst [vmem:[#allocation2 + $0x74] sm:$0xff] %v1215
        %1256 = vrot.lane.b32.xlu0 %v1212, 127
        %v1257 = vpop.permute.xlu0 %1256
        %1258 = vrot.lane.b32.xlu0 %v1213, 127
        %v1259 = vpop.permute.xlu0 %1258
        %1260 = vrot.lane.b32.xlu0 %v1214, 127
        %v1261 = vpop.permute.xlu0 %1260
        %1262 = vrot.lane.b32.xlu0 %v1215, 127
        %v1263 = vpop.permute.xlu0 %1262
        %v1264 = vrot.slane %v1257, 4
        %v1265 = vrot.slane %v1259, 4
        %v1266 = vrot.slane %v1261, 4
        %v1267 = vrot.slane %v1263, 4
        %v1268 = vsel %vm365, %v1264, %v1257
        %v1269 = vsel %vm365, %v1265, %v1259
        %v1270 = vsel %vm365, %v1266, %v1261
        %v1271 = vsel %vm365, %v1267, %v1263
        %1280 = vst.msk [vmem:[#allocation2 + $0x80] sm:$0xff] %vm378, %v1268
        %1281 = vst.msk [vmem:[#allocation2 + $0x88] sm:$0xf] %vm380, %v1264
        %1282 = vst.msk [vmem:[#allocation2 + $0x90] sm:$0xff] %vm378, %v1269
        %1283 = vst.msk [vmem:[#allocation2 + $0x98] sm:$0xf] %vm380, %v1265
        %1284 = vst.msk [vmem:[#allocation2 + $0xa0] sm:$0xff] %vm378, %v1270
        %1285 = vst.msk [vmem:[#allocation2 + $0xa8] sm:$0xf] %vm380, %v1266
        %1286 = vst.msk [vmem:[#allocation2 + $0xb0] sm:$0xff] %vm378, %v1271
        %1287 = vst.msk [vmem:[#allocation2 + $0xb8] sm:$0xf] %vm380, %v1267
        %v1288 = vld [vmem:[#allocation2 + $0x4] sm:$0xff]
        %v1289 = vld [vmem:[#allocation2 + $0x14] sm:$0xff]
        %v1290 = vld [vmem:[#allocation2 + $0x24] sm:$0xff]
        %v1291 = vld [vmem:[#allocation2 + $0x34] sm:$0xff]
        %v1292 = vld [vmem:[#allocation2 + $0x44] sm:$0xff]
        %v1293 = vld [vmem:[#allocation2 + $0x54] sm:$0xff]
        %v1294 = vld [vmem:[#allocation2 + $0x64] sm:$0xff]
        %v1295 = vld [vmem:[#allocation2 + $0x74] sm:$0xff]
        %v1296 = vld [vmem:[#allocation2 + $0x84] sm:$0xff]
        %v1297 = vld [vmem:[#allocation2 + $0x94] sm:$0xff]
        %v1298 = vld [vmem:[#allocation2 + $0xa4] sm:$0xff]
        %v1299 = vld [vmem:[#allocation2 + $0xb4] sm:$0xff]
        %1301 = vset.pattern.permute.xlu0 0
        %1302 = vperm.xlu0 %1301, %v1184
        %v1303 = vpop.permute.xlu0 %1302
        %1306 = vset.pattern.permute.xlu0 0
        %1307 = vperm.xlu0 %1306, %v1185
        %v1308 = vpop.permute.xlu0 %1307
        %1311 = vset.pattern.permute.xlu0 0
        %1312 = vperm.xlu0 %1311, %v1186
        %v1313 = vpop.permute.xlu0 %1312
        %1316 = vset.pattern.permute.xlu0 0
        %1317 = vperm.xlu0 %1316, %v1187
        %v1318 = vpop.permute.xlu0 %1317
        %v1324 = vunpack.c.l.b16 %v1179
        %v1325 = vunpack.c.l.b16 %v1180
        %v1326 = vunpack.c.l.b16 %v1181
        %v1327 = vunpack.c.l.b16 %v1182
        %v1328 = vpack.c.b16 %v1325, %v1324
        %v1329 = vpack.c.b16 %v1327, %v1326
        %v1342 = vunpack.c.l.b16 %v1288
        %v1343 = vunpack.c.h.b16 %v1288
        %v1344 = vunpack.c.l.b16 %v1289
        %v1345 = vunpack.c.h.b16 %v1289
        %v1346 = vunpack.c.l.b16 %v1290
        %v1347 = vunpack.c.h.b16 %v1290
        %v1348 = vunpack.c.l.b16 %v1291
        %v1349 = vunpack.c.h.b16 %v1291
        %v1350 = vunpack.c.l.b16 %v1292
        %v1351 = vunpack.c.h.b16 %v1292
        %v1352 = vunpack.c.l.b16 %v1293
        %v1353 = vunpack.c.h.b16 %v1293
        %v1354 = vunpack.c.l.b16 %v1294
        %v1355 = vunpack.c.h.b16 %v1294
        %v1356 = vunpack.c.l.b16 %v1295
        %v1357 = vunpack.c.h.b16 %v1295
        %v1358 = vunpack.c.l.b16 %v1296
        %v1359 = vunpack.c.h.b16 %v1296
        %v1360 = vunpack.c.l.b16 %v1297
        %v1361 = vunpack.c.h.b16 %v1297
        %v1362 = vunpack.c.l.b16 %v1298
        %v1363 = vunpack.c.h.b16 %v1298
        %v1364 = vunpack.c.l.b16 %v1299
        %v1365 = vunpack.c.h.b16 %v1299
        %v1366 = vpack.c.b16 %v1344, %v1342
        %v1367 = vpack.c.b16 %v1345, %v1343
        %v1368 = vpack.c.b16 %v1348, %v1346
        %v1369 = vpack.c.b16 %v1349, %v1347
        %v1370 = vpack.c.b16 %v1352, %v1350
        %v1371 = vpack.c.b16 %v1353, %v1351
        %v1372 = vpack.c.b16 %v1356, %v1354
        %v1373 = vpack.c.b16 %v1357, %v1355
        %v1374 = vpack.c.b16 %v1360, %v1358
        %v1375 = vpack.c.b16 %v1361, %v1359
        %v1376 = vpack.c.b16 %v1364, %v1362
        %v1377 = vpack.c.b16 %v1365, %v1363
        %v1391 = vsel %vm490, %v1328, 0
        %v1394 = vsel %vm490, %v1329, 0
        %1396 = vmatprep.subr.bf16.mxu0 0
        %1397 = vmatpush1.bf16.msra.mxu0 0
        %1398 = vmatprep.subr.bf16.mxu0 0
        %1399 = vmatpush1.bf16.msra.mxu0 0
        %1400 = vmatprep.subr.bf16.mxu0 %v1377
        %1401 = vmatpush1.bf16.msra.mxu0 %v1376
        %1402 = vmatprep.subr.bf16.mxu0 %v1375
        %1403 = vmatpush1.bf16.msra.mxu0 %v1374
        %1404 = vmatprep.subr.bf16.mxu0 %v1373
        %1405 = vmatpush1.bf16.msra.mxu0 %v1372
        %1406 = vmatprep.subr.bf16.mxu0 %v1371
        %1407 = vmatpush1.bf16.msra.mxu0 %v1370
        %1408 = vmatprep.subr.bf16.mxu0 %v1369
        %1409 = vmatpush1.bf16.msra.mxu0 %v1368
        %1410 = vmatprep.subr.bf16.mxu0 %v1367
        %1411 = vmatpush1.bf16.msra.mxu0 %v1366
        %1412 = vmatprep.subr.bf16.mxu0 0
        %1413 = vmatpush2.bf16.msra.mxu0 0
        %1414 = vmatprep.subr.bf16.mxu0 0
        %1415 = vmatpush2.bf16.msra.mxu0 0
        %1416 = vmatprep.subr.bf16.mxu0 0
        %1417 = vmatpush2.bf16.msra.mxu0 0
        %1418 = vmatprep.subr.bf16.mxu0 0
        %1419 = vmatpush2.bf16.msra.mxu0 0
        %1420 = vmatprep.subr.bf16.mxu0 0
        %1421 = vmatpush2.bf16.msra.mxu0 0
        %1422 = vmatprep.subr.bf16.mxu0 0
        %1423 = vmatpush2.bf16.msra.mxu0 0
        %1424 = vmatprep.subr.bf16.mxu0 0
        %1425 = vmatpush2.bf16.msra.mxu0 0
        %1426 = vmatprep.subr.bf16.mxu0 0
        %1427 = vmatpush2.bf16.msra.mxu0 0
        %1428 = vmatprep.mubr.bf16.mxu0 0
        %1429 = vmatmul.mubr.bf16.gmra.mxu0 %v1391
        %v1430 = vpop.f32.mrf.mxu0
        %v1431 = vadd.f32 %v1303, %v1430
        %v1432 = vpop.f32.mrf.mxu0
        %v1433 = vadd.f32 %v1303, %v1432
        %v1434 = vpop.f32.mrf.mxu0
        %v1435 = vadd.f32 %v1308, %v1434
        %v1436 = vpop.f32.mrf.mxu0
        %v1437 = vadd.f32 %v1308, %v1436
        %1438 = vmatprep.mubr.bf16.mxu0 0
        %1439 = vmatmul.mubr.bf16.gmra.mxu0 %v1394
        %v1440 = vpop.f32.mrf.mxu0
        %v1441 = vadd.f32 %v1313, %v1440
        %v1442 = vpop.f32.mrf.mxu0
        %v1443 = vadd.f32 %v1313, %v1442
        %v1444 = vpop.f32.mrf.mxu0
        %v1445 = vadd.f32 %v1318, %v1444
        %v1446 = vpop.f32.mrf.mxu0
        %v1447 = vadd.f32 %v1318, %v1446
        %1448 = vdwg.mxu0
        %v1449 = vadd.f32 %v1431, %v843
        %v1450 = vadd.f32 %v1433, %v844
        %v1451 = vadd.f32 %v1435, %v845
        %v1452 = vadd.f32 %v1437, %v846
        %v1453 = vadd.f32 %v1441, %v847
        %v1454 = vadd.f32 %v1443, %v848
        %v1455 = vadd.f32 %v1445, %v849
        %v1456 = vadd.f32 %v1447, %v850
        %vm1457 = vcmp.gt.f32.partialorder %v1449, 0.0
        %vm1458 = vcmp.gt.f32.partialorder %v1450, 0.0
        %vm1459 = vcmp.gt.f32.partialorder %v1451, 0.0
        %vm1460 = vcmp.gt.f32.partialorder %v1452, 0.0
        %vm1461 = vcmp.gt.f32.partialorder %v1453, 0.0
        %vm1462 = vcmp.gt.f32.partialorder %v1454, 0.0
        %vm1463 = vcmp.gt.f32.partialorder %v1455, 0.0
        %vm1464 = vcmp.gt.f32.partialorder %v1456, 0.0
        %v1465 = vmul.f32 %v1449, 0.1
        %v1466 = vmul.f32 %v1450, 0.1
        %v1467 = vmul.f32 %v1451, 0.1
        %v1468 = vmul.f32 %v1452, 0.1
        %v1469 = vmul.f32 %v1453, 0.1
        %v1470 = vmul.f32 %v1454, 0.1
        %v1471 = vmul.f32 %v1455, 0.1
        %v1472 = vmul.f32 %v1456, 0.1
        %v1473 = vsel %vm1457, %v1449, %v1465
        %v1474 = vsel %vm1458, %v1450, %v1466
        %v1475 = vsel %vm1459, %v1451, %v1467
        %v1476 = vsel %vm1460, %v1452, %v1468
        %v1477 = vsel %vm1461, %v1453, %v1469
        %v1478 = vsel %vm1462, %v1454, %v1470
        %v1479 = vsel %vm1463, %v1455, %v1471
        %v1480 = vsel %vm1464, %v1456, %v1472
        %s1481 = scalar_lea.vmem %s1, 32
        %v1482 = vld [vmem:[%s1481] sm:$0xf]
        %v1483 = vld [vmem:[%s1481 + $0x4] sm:$0xf]
        %v1484 = vld [vmem:[%s1481 + $0x8] sm:$0xf]
        %v1485 = vld [vmem:[%s1481 + $0xc] sm:$0xf]
        %s1486 = scalar_lea.vmem %s2, 64
        %v1487 = vld [vmem:[%s1486] sm:$0xff]
        %v1488 = vld [vmem:[%s1486 + $0x8] sm:$0xff]
        %v1489 = vld [vmem:[%s1486 + $0x10] sm:$0xff]
        %v1490 = vld [vmem:[%s1486 + $0x18] sm:$0xff]
        %v1491 = vpack.c.bf16 %v1475, %v1473
        %v1492 = vpack.c.bf16 %v1476, %v1474
        %v1493 = vpack.c.bf16 %v1479, %v1477
        %v1494 = vpack.c.bf16 %v1480, %v1478
        %vm1495 = vcmask 35840
        %1496 = vst.msk [vmem:[#allocation2 + $0x4] sm:$0xf] %vm1495, 0
        %1497 = vst.msk [vmem:[#allocation2 + $0x14] sm:$0xf] %vm1495, 0
        %1498 = vst.msk [vmem:[#allocation2 + $0x24] sm:$0xf] %vm1495, 0
        %1499 = vst.msk [vmem:[#allocation2 + $0x34] sm:$0xf] %vm1495, 0
        %vm1500 = vcmask 1044440
        %1501 = vst.msk [vmem:[#allocation2 + $0x88] sm:$0xf] %vm1500, 0
        %1502 = vst.msk [vmem:[#allocation2 + $0x98] sm:$0xf] %vm1500, 0
        %1503 = vst.msk [vmem:[#allocation2 + $0xa8] sm:$0xf] %vm1500, 0
        %1504 = vst.msk [vmem:[#allocation2 + $0xb8] sm:$0xf] %vm1500, 0
        %v1509 = vunpack.c.l.b16 %v1491
        %v1510 = vunpack.c.l.b16 %v1492
        %v1511 = vunpack.c.h.b16 %v1491
        %v1512 = vunpack.c.h.b16 %v1492
        %v1513 = vunpack.c.l.b16 %v1493
        %v1514 = vunpack.c.l.b16 %v1494
        %v1515 = vunpack.c.h.b16 %v1493
        %v1516 = vunpack.c.h.b16 %v1494
        %v1517 = vpack.c.b16 %v1510, %v1509
        %v1518 = vpack.c.b16 %v1512, %v1511
        %v1519 = vpack.c.b16 %v1514, %v1513
        %v1520 = vpack.c.b16 %v1516, %v1515
        %1521 = vrot.lane.b32.xlu0 %v1517, 5
        %v1522 = vpop.permute.xlu0 %1521
        %1523 = vrot.lane.b32.xlu0 %v1518, 5
        %v1524 = vpop.permute.xlu0 %1523
        %1525 = vrot.lane.b32.xlu0 %v1519, 5
        %v1526 = vpop.permute.xlu0 %1525
        %1527 = vrot.lane.b32.xlu0 %v1520, 5
        %v1528 = vpop.permute.xlu0 %1527
        %v1529 = vrot.slane %v1522, 4
        %v1530 = vrot.slane %v1524, 4
        %v1531 = vrot.slane %v1526, 4
        %v1532 = vrot.slane %v1528, 4
        %vm1533 = vcmask 39936
        %v1534 = vsel %vm1533, %v1529, %v1522
        %v1535 = vsel %vm1533, %v1530, %v1524
        %v1536 = vsel %vm1533, %v1531, %v1526
        %v1537 = vsel %vm1533, %v1532, %v1528
        %vm1546 = vcmask 1043496
        %vm1547 = vmor %vm335, %vm1546
        %1548 = vst.msk [vmem:[#allocation2 + $0x4] sm:$0xff] %vm1547, %v1534
        %1549 = vst.msk [vmem:[#allocation2 + $0xc] sm:$0xf] %vm1495, %v1529
        %1550 = vst.msk [vmem:[#allocation2 + $0x14] sm:$0xff] %vm1547, %v1535
        %1551 = vst.msk [vmem:[#allocation2 + $0x1c] sm:$0xf] %vm1495, %v1530
        %1552 = vst.msk [vmem:[#allocation2 + $0x24] sm:$0xff] %vm1547, %v1536
        %1553 = vst.msk [vmem:[#allocation2 + $0x2c] sm:$0xf] %vm1495, %v1531
        %1554 = vst.msk [vmem:[#allocation2 + $0x34] sm:$0xff] %vm1547, %v1537
        %1555 = vst.msk [vmem:[#allocation2 + $0x3c] sm:$0xf] %vm1495, %v1532
        %1560 = vst [vmem:[#allocation2 + $0x44] sm:$0xff] %v1517
        %1561 = vst [vmem:[#allocation2 + $0x54] sm:$0xff] %v1518
        %1562 = vst [vmem:[#allocation2 + $0x64] sm:$0xff] %v1519
        %1563 = vst [vmem:[#allocation2 + $0x74] sm:$0xff] %v1520
        %1564 = vrot.lane.b32.xlu0 %v1517, 123
        %v1565 = vpop.permute.xlu0 %1564
        %1566 = vrot.lane.b32.xlu0 %v1518, 123
        %v1567 = vpop.permute.xlu0 %1566
        %1568 = vrot.lane.b32.xlu0 %v1519, 123
        %v1569 = vpop.permute.xlu0 %1568
        %1570 = vrot.lane.b32.xlu0 %v1520, 123
        %v1571 = vpop.permute.xlu0 %1570
        %v1572 = vrot.slane %v1565, 4
        %v1573 = vrot.slane %v1567, 4
        %v1574 = vrot.slane %v1569, 4
        %v1575 = vrot.slane %v1571, 4
        %vm1576 = vcmask 1006592
        %v1577 = vsel %vm1576, %v1572, %v1565
        %v1578 = vsel %vm1576, %v1573, %v1567
        %v1579 = vsel %vm1576, %v1574, %v1569
        %v1580 = vsel %vm1576, %v1575, %v1571
        %vm1589 = vmor %vm335, %vm1500
        %1590 = vst.msk [vmem:[#allocation2 + $0x80] sm:$0xff] %vm1589, %v1577
        %vm1591 = vcmask 1002496
        %1592 = vst.msk [vmem:[#allocation2 + $0x88] sm:$0xf] %vm1591, %v1572
        %1593 = vst.msk [vmem:[#allocation2 + $0x90] sm:$0xff] %vm1589, %v1578
        %1594 = vst.msk [vmem:[#allocation2 + $0x98] sm:$0xf] %vm1591, %v1573
        %1595 = vst.msk [vmem:[#allocation2 + $0xa0] sm:$0xff] %vm1589, %v1579
        %1596 = vst.msk [vmem:[#allocation2 + $0xa8] sm:$0xf] %vm1591, %v1574
        %1597 = vst.msk [vmem:[#allocation2 + $0xb0] sm:$0xff] %vm1589, %v1580
        %1598 = vst.msk [vmem:[#allocation2 + $0xb8] sm:$0xf] %vm1591, %v1575
        %v1599 = vld [vmem:[#allocation2 + $0x4] sm:$0xff]
        %v1600 = vld [vmem:[#allocation2 + $0x14] sm:$0xff]
        %v1601 = vld [vmem:[#allocation2 + $0x24] sm:$0xff]
        %v1602 = vld [vmem:[#allocation2 + $0x34] sm:$0xff]
        %v1603 = vld [vmem:[#allocation2 + $0x44] sm:$0xff]
        %v1604 = vld [vmem:[#allocation2 + $0x54] sm:$0xff]
        %v1605 = vld [vmem:[#allocation2 + $0x64] sm:$0xff]
        %v1606 = vld [vmem:[#allocation2 + $0x74] sm:$0xff]
        %v1607 = vld [vmem:[#allocation2 + $0x84] sm:$0xff]
        %v1608 = vld [vmem:[#allocation2 + $0x94] sm:$0xff]
        %v1609 = vld [vmem:[#allocation2 + $0xa4] sm:$0xff]
        %v1610 = vld [vmem:[#allocation2 + $0xb4] sm:$0xff]
        %1612 = vset.pattern.permute.xlu0 0
        %1613 = vperm.xlu0 %1612, %v1487
        %v1614 = vpop.permute.xlu0 %1613
        %1617 = vset.pattern.permute.xlu0 0
        %1618 = vperm.xlu0 %1617, %v1488
        %v1619 = vpop.permute.xlu0 %1618
        %1622 = vset.pattern.permute.xlu0 0
        %1623 = vperm.xlu0 %1622, %v1489
        %v1624 = vpop.permute.xlu0 %1623
        %1627 = vset.pattern.permute.xlu0 0
        %1628 = vperm.xlu0 %1627, %v1490
        %v1629 = vpop.permute.xlu0 %1628
        %v1635 = vunpack.c.l.b16 %v1482
        %v1636 = vunpack.c.l.b16 %v1483
        %v1637 = vunpack.c.l.b16 %v1484
        %v1638 = vunpack.c.l.b16 %v1485
        %v1639 = vpack.c.b16 %v1636, %v1635
        %v1640 = vpack.c.b16 %v1638, %v1637
        %v1653 = vunpack.c.l.b16 %v1599
        %v1654 = vunpack.c.h.b16 %v1599
        %v1655 = vunpack.c.l.b16 %v1600
        %v1656 = vunpack.c.h.b16 %v1600
        %v1657 = vunpack.c.l.b16 %v1601
        %v1658 = vunpack.c.h.b16 %v1601
        %v1659 = vunpack.c.l.b16 %v1602
        %v1660 = vunpack.c.h.b16 %v1602
        %v1661 = vunpack.c.l.b16 %v1603
        %v1662 = vunpack.c.h.b16 %v1603
        %v1663 = vunpack.c.l.b16 %v1604
        %v1664 = vunpack.c.h.b16 %v1604
        %v1665 = vunpack.c.l.b16 %v1605
        %v1666 = vunpack.c.h.b16 %v1605
        %v1667 = vunpack.c.l.b16 %v1606
        %v1668 = vunpack.c.h.b16 %v1606
        %v1669 = vunpack.c.l.b16 %v1607
        %v1670 = vunpack.c.h.b16 %v1607
        %v1671 = vunpack.c.l.b16 %v1608
        %v1672 = vunpack.c.h.b16 %v1608
        %v1673 = vunpack.c.l.b16 %v1609
        %v1674 = vunpack.c.h.b16 %v1609
        %v1675 = vunpack.c.l.b16 %v1610
        %v1676 = vunpack.c.h.b16 %v1610
        %v1677 = vpack.c.b16 %v1655, %v1653
        %v1678 = vpack.c.b16 %v1656, %v1654
        %v1679 = vpack.c.b16 %v1659, %v1657
        %v1680 = vpack.c.b16 %v1660, %v1658
        %v1681 = vpack.c.b16 %v1663, %v1661
        %v1682 = vpack.c.b16 %v1664, %v1662
        %v1683 = vpack.c.b16 %v1667, %v1665
        %v1684 = vpack.c.b16 %v1668, %v1666
        %v1685 = vpack.c.b16 %v1671, %v1669
        %v1686 = vpack.c.b16 %v1672, %v1670
        %v1687 = vpack.c.b16 %v1675, %v1673
        %v1688 = vpack.c.b16 %v1676, %v1674
        %v1702 = vsel %vm490, %v1639, 0
        %v1705 = vsel %vm490, %v1640, 0
        %1707 = vmatprep.subr.bf16.mxu0 0
        %1708 = vmatpush1.bf16.msra.mxu0 0
        %1709 = vmatprep.subr.bf16.mxu0 0
        %1710 = vmatpush1.bf16.msra.mxu0 0
        %1711 = vmatprep.subr.bf16.mxu0 %v1688
        %1712 = vmatpush1.bf16.msra.mxu0 %v1687
        %1713 = vmatprep.subr.bf16.mxu0 %v1686
        %1714 = vmatpush1.bf16.msra.mxu0 %v1685
        %1715 = vmatprep.subr.bf16.mxu0 %v1684
        %1716 = vmatpush1.bf16.msra.mxu0 %v1683
        %1717 = vmatprep.subr.bf16.mxu0 %v1682
        %1718 = vmatpush1.bf16.msra.mxu0 %v1681
        %1719 = vmatprep.subr.bf16.mxu0 %v1680
        %1720 = vmatpush1.bf16.msra.mxu0 %v1679
        %1721 = vmatprep.subr.bf16.mxu0 %v1678
        %1722 = vmatpush1.bf16.msra.mxu0 %v1677
        %1723 = vmatprep.subr.bf16.mxu0 0
        %1724 = vmatpush2.bf16.msra.mxu0 0
        %1725 = vmatprep.subr.bf16.mxu0 0
        %1726 = vmatpush2.bf16.msra.mxu0 0
        %1727 = vmatprep.subr.bf16.mxu0 0
        %1728 = vmatpush2.bf16.msra.mxu0 0
        %1729 = vmatprep.subr.bf16.mxu0 0
        %1730 = vmatpush2.bf16.msra.mxu0 0
        %1731 = vmatprep.subr.bf16.mxu0 0
        %1732 = vmatpush2.bf16.msra.mxu0 0
        %1733 = vmatprep.subr.bf16.mxu0 0
        %1734 = vmatpush2.bf16.msra.mxu0 0
        %1735 = vmatprep.subr.bf16.mxu0 0
        %1736 = vmatpush2.bf16.msra.mxu0 0
        %1737 = vmatprep.subr.bf16.mxu0 0
        %1738 = vmatpush2.bf16.msra.mxu0 0
        %1739 = vmatprep.mubr.bf16.mxu0 0
        %1740 = vmatmul.mubr.bf16.gmra.mxu0 %v1702
        %v1741 = vpop.f32.mrf.mxu0
        %v1742 = vadd.f32 %v1614, %v1741
        %v1743 = vpop.f32.mrf.mxu0
        %v1744 = vadd.f32 %v1614, %v1743
        %v1745 = vpop.f32.mrf.mxu0
        %v1746 = vadd.f32 %v1619, %v1745
        %v1747 = vpop.f32.mrf.mxu0
        %v1748 = vadd.f32 %v1619, %v1747
        %1749 = vmatprep.mubr.bf16.mxu0 0
        %1750 = vmatmul.mubr.bf16.gmra.mxu0 %v1705
        %v1751 = vpop.f32.mrf.mxu0
        %v1752 = vadd.f32 %v1624, %v1751
        %v1753 = vpop.f32.mrf.mxu0
        %v1754 = vadd.f32 %v1624, %v1753
        %v1755 = vpop.f32.mrf.mxu0
        %v1756 = vadd.f32 %v1629, %v1755
        %v1757 = vpop.f32.mrf.mxu0
        %v1758 = vadd.f32 %v1629, %v1757
        %1759 = vdwg.mxu0
        %vm1760 = vcmp.gt.f32.partialorder %v1742, 0.0
        %vm1761 = vcmp.gt.f32.partialorder %v1744, 0.0
        %vm1762 = vcmp.gt.f32.partialorder %v1746, 0.0
        %vm1763 = vcmp.gt.f32.partialorder %v1748, 0.0
        %vm1764 = vcmp.gt.f32.partialorder %v1752, 0.0
        %vm1765 = vcmp.gt.f32.partialorder %v1754, 0.0
        %vm1766 = vcmp.gt.f32.partialorder %v1756, 0.0
        %vm1767 = vcmp.gt.f32.partialorder %v1758, 0.0
        %v1768 = vmul.f32 %v1742, 0.1
        %v1769 = vmul.f32 %v1744, 0.1
        %v1770 = vmul.f32 %v1746, 0.1
        %v1771 = vmul.f32 %v1748, 0.1
        %v1772 = vmul.f32 %v1752, 0.1
        %v1773 = vmul.f32 %v1754, 0.1
        %v1774 = vmul.f32 %v1756, 0.1
        %v1775 = vmul.f32 %v1758, 0.1
        %v1776 = vsel %vm1760, %v1742, %v1768
        %v1777 = vsel %vm1761, %v1744, %v1769
        %v1778 = vsel %vm1762, %v1746, %v1770
        %v1779 = vsel %vm1763, %v1748, %v1771
        %v1780 = vsel %vm1764, %v1752, %v1772
        %v1781 = vsel %vm1765, %v1754, %v1773
        %v1782 = vsel %vm1766, %v1756, %v1774
        %v1783 = vsel %vm1767, %v1758, %v1775
        %s1784 = scalar_lea.vmem [#allocation3], 32
        %v1785 = vld [vmem:[%s1784] sm:$0xf]
        %v1786 = vld [vmem:[%s1784 + $0x4] sm:$0xf]
        %v1787 = vld [vmem:[%s1784 + $0x8] sm:$0xf]
        %v1788 = vld [vmem:[%s1784 + $0xc] sm:$0xf]
        %s1789 = scalar_lea.vmem %s4, 64
        %v1790 = vld [vmem:[%s1789] sm:$0xff]
        %v1791 = vld [vmem:[%s1789 + $0x8] sm:$0xff]
        %v1792 = vld [vmem:[%s1789 + $0x10] sm:$0xff]
        %v1793 = vld [vmem:[%s1789 + $0x18] sm:$0xff]
        %v1794 = vpack.c.bf16 %v1778, %v1776
        %v1795 = vpack.c.bf16 %v1779, %v1777
        %v1796 = vpack.c.bf16 %v1782, %v1780
        %v1797 = vpack.c.bf16 %v1783, %v1781
        %1798 = vst.msk [vmem:[#allocation2 + $0x4] sm:$0xf] %vm283, 0
        %1799 = vst.msk [vmem:[#allocation2 + $0x14] sm:$0xf] %vm283, 0
        %1800 = vst.msk [vmem:[#allocation2 + $0x24] sm:$0xf] %vm283, 0
        %1801 = vst.msk [vmem:[#allocation2 + $0x34] sm:$0xf] %vm283, 0
        %1802 = vst.msk [vmem:[#allocation2 + $0x88] sm:$0xf] %vm288, 0
        %1803 = vst.msk [vmem:[#allocation2 + $0x98] sm:$0xf] %vm288, 0
        %1804 = vst.msk [vmem:[#allocation2 + $0xa8] sm:$0xf] %vm288, 0
        %1805 = vst.msk [vmem:[#allocation2 + $0xb8] sm:$0xf] %vm288, 0
        %v1810 = vunpack.c.l.b16 %v1794
        %v1811 = vunpack.c.l.b16 %v1795
        %v1812 = vunpack.c.h.b16 %v1794
        %v1813 = vunpack.c.h.b16 %v1795
        %v1814 = vunpack.c.l.b16 %v1796
        %v1815 = vunpack.c.l.b16 %v1797
        %v1816 = vunpack.c.h.b16 %v1796
        %v1817 = vunpack.c.h.b16 %v1797
        %v1818 = vpack.c.b16 %v1811, %v1810
        %v1819 = vpack.c.b16 %v1813, %v1812
        %v1820 = vpack.c.b16 %v1815, %v1814
        %v1821 = vpack.c.b16 %v1817, %v1816
        %1822 = vrot.lane.b32.xlu0 %v1818, 1
        %v1823 = vpop.permute.xlu0 %1822
        %1824 = vrot.lane.b32.xlu0 %v1819, 1
        %v1825 = vpop.permute.xlu0 %1824
        %1826 = vrot.lane.b32.xlu0 %v1820, 1
        %v1827 = vpop.permute.xlu0 %1826
        %1828 = vrot.lane.b32.xlu0 %v1821, 1
        %v1829 = vpop.permute.xlu0 %1828
        %v1830 = vrot.slane %v1823, 4
        %v1831 = vrot.slane %v1825, 4
        %v1832 = vrot.slane %v1827, 4
        %v1833 = vrot.slane %v1829, 4
        %v1834 = vsel %vm321, %v1830, %v1823
        %v1835 = vsel %vm321, %v1831, %v1825
        %v1836 = vsel %vm321, %v1832, %v1827
        %v1837 = vsel %vm321, %v1833, %v1829
        %1846 = vst.msk [vmem:[#allocation2 + $0x4] sm:$0xff] %vm336, %v1834
        %1847 = vst.msk [vmem:[#allocation2 + $0xc] sm:$0xf] %vm283, %v1830
        %1848 = vst.msk [vmem:[#allocation2 + $0x14] sm:$0xff] %vm336, %v1835
        %1849 = vst.msk [vmem:[#allocation2 + $0x1c] sm:$0xf] %vm283, %v1831
        %1850 = vst.msk [vmem:[#allocation2 + $0x24] sm:$0xff] %vm336, %v1836
        %1851 = vst.msk [vmem:[#allocation2 + $0x2c] sm:$0xf] %vm283, %v1832
        %1852 = vst.msk [vmem:[#allocation2 + $0x34] sm:$0xff] %vm336, %v1837
        %1853 = vst.msk [vmem:[#allocation2 + $0x3c] sm:$0xf] %vm283, %v1833
        %1858 = vst [vmem:[#allocation2 + $0x44] sm:$0xff] %v1818
        %1859 = vst [vmem:[#allocation2 + $0x54] sm:$0xff] %v1819
        %1860 = vst [vmem:[#allocation2 + $0x64] sm:$0xff] %v1820
        %1861 = vst [vmem:[#allocation2 + $0x74] sm:$0xff] %v1821
        %1862 = vrot.lane.b32.xlu0 %v1818, 127
        %v1863 = vpop.permute.xlu0 %1862
        %1864 = vrot.lane.b32.xlu0 %v1819, 127
        %v1865 = vpop.permute.xlu0 %1864
        %1866 = vrot.lane.b32.xlu0 %v1820, 127
        %v1867 = vpop.permute.xlu0 %1866
        %1868 = vrot.lane.b32.xlu0 %v1821, 127
        %v1869 = vpop.permute.xlu0 %1868
        %v1870 = vrot.slane %v1863, 4
        %v1871 = vrot.slane %v1865, 4
        %v1872 = vrot.slane %v1867, 4
        %v1873 = vrot.slane %v1869, 4
        %v1874 = vsel %vm365, %v1870, %v1863
        %v1875 = vsel %vm365, %v1871, %v1865
        %v1876 = vsel %vm365, %v1872, %v1867
        %v1877 = vsel %vm365, %v1873, %v1869
        %1886 = vst.msk [vmem:[#allocation2 + $0x80] sm:$0xff] %vm378, %v1874
        %1887 = vst.msk [vmem:[#allocation2 + $0x88] sm:$0xf] %vm380, %v1870
        %1888 = vst.msk [vmem:[#allocation2 + $0x90] sm:$0xff] %vm378, %v1875
        %1889 = vst.msk [vmem:[#allocation2 + $0x98] sm:$0xf] %vm380, %v1871
        %1890 = vst.msk [vmem:[#allocation2 + $0xa0] sm:$0xff] %vm378, %v1876
        %1891 = vst.msk [vmem:[#allocation2 + $0xa8] sm:$0xf] %vm380, %v1872
        %1892 = vst.msk [vmem:[#allocation2 + $0xb0] sm:$0xff] %vm378, %v1877
        %1893 = vst.msk [vmem:[#allocation2 + $0xb8] sm:$0xf] %vm380, %v1873
        %v1894 = vld [vmem:[#allocation2 + $0x4] sm:$0xff]
        %v1895 = vld [vmem:[#allocation2 + $0x14] sm:$0xff]
        %v1896 = vld [vmem:[#allocation2 + $0x24] sm:$0xff]
        %v1897 = vld [vmem:[#allocation2 + $0x34] sm:$0xff]
        %v1898 = vld [vmem:[#allocation2 + $0x44] sm:$0xff]
        %v1899 = vld [vmem:[#allocation2 + $0x54] sm:$0xff]
        %v1900 = vld [vmem:[#allocation2 + $0x64] sm:$0xff]
        %v1901 = vld [vmem:[#allocation2 + $0x74] sm:$0xff]
        %v1902 = vld [vmem:[#allocation2 + $0x84] sm:$0xff]
        %v1903 = vld [vmem:[#allocation2 + $0x94] sm:$0xff]
        %v1904 = vld [vmem:[#allocation2 + $0xa4] sm:$0xff]
        %v1905 = vld [vmem:[#allocation2 + $0xb4] sm:$0xff]
        %1907 = vset.pattern.permute.xlu0 0
        %1908 = vperm.xlu0 %1907, %v1790
        %v1909 = vpop.permute.xlu0 %1908
        %1912 = vset.pattern.permute.xlu0 0
        %1913 = vperm.xlu0 %1912, %v1791
        %v1914 = vpop.permute.xlu0 %1913
        %1917 = vset.pattern.permute.xlu0 0
        %1918 = vperm.xlu0 %1917, %v1792
        %v1919 = vpop.permute.xlu0 %1918
        %1922 = vset.pattern.permute.xlu0 0
        %1923 = vperm.xlu0 %1922, %v1793
        %v1924 = vpop.permute.xlu0 %1923
        %v1930 = vunpack.c.l.b16 %v1785
        %v1931 = vunpack.c.l.b16 %v1786
        %v1932 = vunpack.c.l.b16 %v1787
        %v1933 = vunpack.c.l.b16 %v1788
        %v1934 = vpack.c.b16 %v1931, %v1930
        %v1935 = vpack.c.b16 %v1933, %v1932
        %v1948 = vunpack.c.l.b16 %v1894
        %v1949 = vunpack.c.h.b16 %v1894
        %v1950 = vunpack.c.l.b16 %v1895
        %v1951 = vunpack.c.h.b16 %v1895
        %v1952 = vunpack.c.l.b16 %v1896
        %v1953 = vunpack.c.h.b16 %v1896
        %v1954 = vunpack.c.l.b16 %v1897
        %v1955 = vunpack.c.h.b16 %v1897
        %v1956 = vunpack.c.l.b16 %v1898
        %v1957 = vunpack.c.h.b16 %v1898
        %v1958 = vunpack.c.l.b16 %v1899
        %v1959 = vunpack.c.h.b16 %v1899
        %v1960 = vunpack.c.l.b16 %v1900
        %v1961 = vunpack.c.h.b16 %v1900
        %v1962 = vunpack.c.l.b16 %v1901
        %v1963 = vunpack.c.h.b16 %v1901
        %v1964 = vunpack.c.l.b16 %v1902
        %v1965 = vunpack.c.h.b16 %v1902
        %v1966 = vunpack.c.l.b16 %v1903
        %v1967 = vunpack.c.h.b16 %v1903
        %v1968 = vunpack.c.l.b16 %v1904
        %v1969 = vunpack.c.h.b16 %v1904
        %v1970 = vunpack.c.l.b16 %v1905
        %v1971 = vunpack.c.h.b16 %v1905
        %v1972 = vpack.c.b16 %v1950, %v1948
        %v1973 = vpack.c.b16 %v1951, %v1949
        %v1974 = vpack.c.b16 %v1954, %v1952
        %v1975 = vpack.c.b16 %v1955, %v1953
        %v1976 = vpack.c.b16 %v1958, %v1956
        %v1977 = vpack.c.b16 %v1959, %v1957
        %v1978 = vpack.c.b16 %v1962, %v1960
        %v1979 = vpack.c.b16 %v1963, %v1961
        %v1980 = vpack.c.b16 %v1966, %v1964
        %v1981 = vpack.c.b16 %v1967, %v1965
        %v1982 = vpack.c.b16 %v1970, %v1968
        %v1983 = vpack.c.b16 %v1971, %v1969
        %v1997 = vsel %vm490, %v1934, 0
        %v2000 = vsel %vm490, %v1935, 0
        %2002 = vmatprep.subr.bf16.mxu0 0
        %2003 = vmatpush1.bf16.msra.mxu0 0
        %2004 = vmatprep.subr.bf16.mxu0 0
        %2005 = vmatpush1.bf16.msra.mxu0 0
        %2006 = vmatprep.subr.bf16.mxu0 %v1983
        %2007 = vmatpush1.bf16.msra.mxu0 %v1982
        %2008 = vmatprep.subr.bf16.mxu0 %v1981
        %2009 = vmatpush1.bf16.msra.mxu0 %v1980
        %2010 = vmatprep.subr.bf16.mxu0 %v1979
        %2011 = vmatpush1.bf16.msra.mxu0 %v1978
        %2012 = vmatprep.subr.bf16.mxu0 %v1977
        %2013 = vmatpush1.bf16.msra.mxu0 %v1976
        %2014 = vmatprep.subr.bf16.mxu0 %v1975
        %2015 = vmatpush1.bf16.msra.mxu0 %v1974
        %2016 = vmatprep.subr.bf16.mxu0 %v1973
        %2017 = vmatpush1.bf16.msra.mxu0 %v1972
        %2018 = vmatprep.subr.bf16.mxu0 0
        %2019 = vmatpush2.bf16.msra.mxu0 0
        %2020 = vmatprep.subr.bf16.mxu0 0
        %2021 = vmatpush2.bf16.msra.mxu0 0
        %2022 = vmatprep.subr.bf16.mxu0 0
        %2023 = vmatpush2.bf16.msra.mxu0 0
        %2024 = vmatprep.subr.bf16.mxu0 0
        %2025 = vmatpush2.bf16.msra.mxu0 0
        %2026 = vmatprep.subr.bf16.mxu0 0
        %2027 = vmatpush2.bf16.msra.mxu0 0
        %2028 = vmatprep.subr.bf16.mxu0 0
        %2029 = vmatpush2.bf16.msra.mxu0 0
        %2030 = vmatprep.subr.bf16.mxu0 0
        %2031 = vmatpush2.bf16.msra.mxu0 0
        %2032 = vmatprep.subr.bf16.mxu0 0
        %2033 = vmatpush2.bf16.msra.mxu0 0
        %2034 = vmatprep.mubr.bf16.mxu0 0
        %2035 = vmatmul.mubr.bf16.gmra.mxu0 %v1997
        %v2036 = vpop.f32.mrf.mxu0
        %v2037 = vadd.f32 %v1909, %v2036
        %v2038 = vpop.f32.mrf.mxu0
        %v2039 = vadd.f32 %v1909, %v2038
        %v2040 = vpop.f32.mrf.mxu0
        %v2041 = vadd.f32 %v1914, %v2040
        %v2042 = vpop.f32.mrf.mxu0
        %v2043 = vadd.f32 %v1914, %v2042
        %2044 = vmatprep.mubr.bf16.mxu0 0
        %2045 = vmatmul.mubr.bf16.gmra.mxu0 %v2000
        %v2046 = vpop.f32.mrf.mxu0
        %v2047 = vadd.f32 %v1919, %v2046
        %v2048 = vpop.f32.mrf.mxu0
        %v2049 = vadd.f32 %v1919, %v2048
        %v2050 = vpop.f32.mrf.mxu0
        %v2051 = vadd.f32 %v1924, %v2050
        %v2052 = vpop.f32.mrf.mxu0
        %v2053 = vadd.f32 %v1924, %v2052
        %2054 = vdwg.mxu0
        %v2055 = vadd.f32 %v2037, %v1449
        %v2056 = vadd.f32 %v2039, %v1450
        %v2057 = vadd.f32 %v2041, %v1451
        %v2058 = vadd.f32 %v2043, %v1452
        %v2059 = vadd.f32 %v2047, %v1453
        %v2060 = vadd.f32 %v2049, %v1454
        %v2061 = vadd.f32 %v2051, %v1455
        %v2062 = vadd.f32 %v2053, %v1456
        %2063 = vst [vmem:[%s232] sm:$0xff] %v2055
        %2064 = vst [vmem:[%s232 + $0x8] sm:$0xff] %v2056
        %2065 = vst [vmem:[%s232 + $0x10] sm:$0xff] %v2057
        %2066 = vst [vmem:[%s232 + $0x18] sm:$0xff] %v2058
        %2067 = vst [vmem:[%s232 + $0x20] sm:$0xff] %v2059
        %2068 = vst [vmem:[%s232 + $0x28] sm:$0xff] %v2060
        %2069 = vst [vmem:[%s232 + $0x30] sm:$0xff] %v2061
        %2070 = vst [vmem:[%s232 + $0x38] sm:$0xff] %v2062
        %s2071 = sand.u32 %s138, 1
        %s2072 = scalar_lea.sflag [#allocation5], %s2071
        %s2073 = sand.u32 %s138, 1
        %s2074 = smul.addr %s2073, 64
        %s2075 = scalar_lea.vmem [#allocation6], %s2074
        // Predicated region
        $region45: #{tpu_custom_call.1} parent=39 // pred_check
          %p2076 = pneg %p148
        $region46: #{tpu_custom_call.1} parent=39 // pred_check_branch
          %2078 = sbr.rel (%p2076) target = $region48
        $region47: #{tpu_custom_call.1} parent=39 // pred_region
          %s2080 = ssub.s32 1024, 1024
          %2081 = vsyncadd %s2072, %s2080
          %s2082 = smul.addr %s20, 8
          %s2083 = smul.addr %s2082, 128
          %s2084 = scalar_lea.hbm %s5, %s2083
          %s2085 = sshll.u32 %s2075, 4
          %s2086 = int_to_ptr.vmem [resolvable:$true] %s2085
          %2091 = dma.vmem_to_hbm [thread:$0]  %s2086, 1024, %s2084, %s2072, 256, 256, 16
        $region48: #{tpu_custom_call.1} parent=39 // pred_fallthru
          _
      $region40: #{tpu_custom_call.1} parent=5 // pred_fallthru
        _
      %p2092 = scmp.le.s32.totalorder 2, %s15
      // Predicated region
      $region49: #{tpu_custom_call.1} parent=5 // pred_check
        %p2093 = pneg %p2092
      $region50: #{tpu_custom_call.1} parent=5 // pred_check_branch
        %2095 = sbr.rel (%p2093) target = $region52
      $region51: #{tpu_custom_call.1} parent=5 // pred_region
        %s2096 = ssub.s32 %s15, 2
        // Predicated region
        $region53: #{tpu_custom_call.1} parent=51 // pred_check
          %p2097 = pneg %p154
        $region54: #{tpu_custom_call.1} parent=51 // pred_check_branch
          %2099 = sbr.rel (%p2097) target = $region56
        $region55: #{tpu_custom_call.1} parent=51 // pred_region
          %s2100 = sand.u32 %s139, 1
          %s2101 = scalar_lea.sflag [#allocation5], %s2100
          %s2102 = sand.u32 %s139, 1
          %s2103 = smul.addr %s2102, 64
          %s2104 = scalar_lea.vmem [#allocation6], %s2103
          %2105 = dma.done %s2101, 1024
        $region56: #{tpu_custom_call.1} parent=51 // pred_fallthru
          _
      $region52: #{tpu_custom_call.1} parent=5 // pred_fallthru
        _
    $region6: #{tpu_custom_call.1} parent=1 // loop_footer
      %s19 = sadd.s32 1, %s15
    $region7: #{tpu_custom_call.1} parent=1 // loop_footer_branch
      %14 = sbr.rel target = $region3
    $region8: #{tpu_custom_call.1} parent=1 // loop_exit
      _
    %2106 = vsyncpa [#allocation4], 1
    %s2107 = scalar_lea.sflag [#allocation4], 1
    %2108 = vsyncpa %s2107, 1
    %2109 = vsyncpa [#allocation5], 1
    %s2110 = scalar_lea.sflag [#allocation5], 1
    %2111 = vsyncpa %s2110, 1

</llo_original>
